<compile_context>
chip_gen: v6e
topology: v6e:2x2x1
jax: 0.10.0
libtpu: 0.0.40
codegen_flags: <defaults>
</compile_context>

<pallas_src>
import math
from functools import partial

import jax
import jax.numpy as jnp
from jax.experimental import pallas as pl
from jax.experimental.pallas import tpu as pltpu


_GELU_C = math.sqrt(2.0 / math.pi)


# --------------------------- shared math helpers ---------------------------

def _gelu(x):
    # matches the repo's custom GELU (tanh approximation)
    return 0.5 * x * (1.0 + jnp.tanh(_GELU_C * (x + 0.044715 * x * x * x)))


def _layernorm_kernel(x, a, b, eps=1e-6):
    # matches the repo's LayerNorm: unbiased std, (std + eps) denominator
    h = x.shape[-1]
    mu = jnp.mean(x, axis=-1, keepdims=True)
    var = jnp.sum((x - mu) ** 2, axis=-1, keepdims=True) / (h - 1)
    inv = pl.reciprocal(jnp.sqrt(var) + eps, approx=True)
    return a * (x - mu) * inv + b


def _layernorm_ref(x, a, b, eps=1e-6):
    h = x.shape[-1]
    mu = jnp.mean(x, axis=-1, keepdims=True)
    var = jnp.sum((x - mu) ** 2, axis=-1, keepdims=True) / (h - 1)
    return a * (x - mu) / (jnp.sqrt(var) + eps) + b


# ----------------------- fused encoder kernel body -----------------------

def bert_encoder_kernel(x_ref, mask_ref,
                        wq_ref, bq_ref, wk_ref, bk_ref, wv_ref, bv_ref,
                        wo_ref, bo_ref,
                        w1_ref, b1_ref, w2_ref, b2_ref,
                        ln1a_ref, ln1b_ref, ln2a_ref, ln2b_ref,
                        out_ref, *, n_heads):
    block_b, S, H = x_ref.shape
    d_k = H // n_heads
    M = block_b * S
    f32, bf16 = jnp.float32, jnp.bfloat16
    layer = pl.program_id(1)

    # out_ref's block index is constant along the layer axis, so it stays resident
    # in VMEM and doubles as the residual-stream carry buffer across layers.
    @pl.when(layer == 0)
    def _():
        out_ref[...] = x_ref[...]

    x = out_ref[...].reshape(M, H)          # (M, H) f32 residual stream
    keep = mask_ref[...] > 0.0              # (block_b, 1, S); True = real (non-pad) key

    # ---- sublayer 1: pre-norm multi-head self-attention + residual ----
    xn = _layernorm_kernel(x, ln1a_ref[0], ln1b_ref[0]).astype(bf16)
    # fused, lane-dense projections over all rows of the block (MXU: M x H x H)
    q = jnp.dot(xn, wq_ref[0], preferred_element_type=f32) + bq_ref[0]
    k = jnp.dot(xn, wk_ref[0], preferred_element_type=f32) + bk_ref[0]
    v = jnp.dot(xn, wv_ref[0], preferred_element_type=f32) + bv_ref[0]
    # fold 1/sqrt(d_k) into q here (cheaper than scaling the (nh,S,S) scores)
    q = q * (1.0 / math.sqrt(d_k))

    ctx_parts = []
    for b in range(block_b):                # tiny static loop over sequences in block
        qb = q[b * S:(b + 1) * S, :]        # (S, H)
        kb = k[b * S:(b + 1) * S, :]
        vb = v[b * S:(b + 1) * S, :]
        # head-major (n_heads, S, d_k) using only minor 2-D transposes and
        # layout-preserving reshapes (d_k is a multiple of 8).
        qT = qb.T.reshape(n_heads, d_k, S)  # (nh, dk, S)
        kT = kb.T.reshape(n_heads, d_k, S)
        vT = vb.T.reshape(n_heads, d_k, S)
        qh = jnp.swapaxes(qT, -1, -2).astype(bf16)   # (nh, S, dk)
        kh = jnp.swapaxes(kT, -1, -2).astype(bf16)

        # head-batched scores: (nh, S, S), accumulated in f32
        scores = jnp.einsum('nqd,nkd->nqk', qh, kh, preferred_element_type=f32)
        scores = jnp.where(keep[b][None, :, :], scores, -1e9)   # masked_fill(mask==0)
        scores = scores - jnp.max(scores, axis=-1, keepdims=True)
        p = jnp.exp(scores)
        p = p * pl.reciprocal(jnp.sum(p, axis=-1, keepdims=True), approx=True)

        # context^T = V^T @ P^T per head: (nh, dk, S)
        ctxT = jnp.einsum('ndk,nqk->ndq', vT.astype(bf16), p.astype(bf16),
                          preferred_element_type=f32)
        ctx_parts.append(ctxT.reshape(H, S).T)       # (S, H), heads concatenated
    ctx = ctx_parts[0] if block_b == 1 else jnp.concatenate(ctx_parts, axis=0)

    # fused output projection: one (M,H) @ (H,H) matmul (K = full hidden)
    attn = jnp.dot(ctx.astype(bf16), wo_ref[0],
                   preferred_element_type=f32) + bo_ref[0]
    x1 = x + attn

    # ---- sublayer 2: pre-norm position-wise feed-forward + residual ----
    xn2 = _layernorm_kernel(x1, ln2a_ref[0], ln2b_ref[0]).astype(bf16)
    hid = jnp.dot(xn2, w1_ref[0], preferred_element_type=f32) + b1_ref[0]
    hid = _gelu(hid).astype(bf16)
    ff = jnp.dot(hid, w2_ref[0], preferred_element_type=f32) + b2_ref[0]

    out_ref[...] = (x1 + ff).reshape(block_b, S, H)


# ----------------------------- encoder wrapper ----------------------------

def bert_encoder(x, key_valid, params, n_heads, block_b=None):
    B, S, H = x.shape
    L = params['wq'].shape[0]
    d_k = H // n_heads
    assert H % n_heads == 0 and d_k % 8 == 0, "head dim must be a multiple of 8"
    assert S % 8 == 0, "sequence length must be a multiple of 8 (sublane tile)"
    if block_b is None:
        # keep >= 2 parallel grid steps when possible (v7x has 2 TensorCores);
        # on 1-TC chips a larger block_b is strictly better.
        block_b = max(1, B // 2)
    assert B % block_b == 0
    nb = B // block_b

    names = ('wq', 'bq', 'wk', 'bk', 'wv', 'bv', 'wo', 'bo',
             'w1', 'b1', 'w2', 'b2', 'ln1a', 'ln1b', 'ln2a', 'ln2b')
    weights = [params[n] for n in names]

    in_specs = [pl.BlockSpec((block_b, S, H), lambda b, l: (b, 0, 0)),
                pl.BlockSpec((block_b, 1, S), lambda b, l: (b, 0, 0))]
    # per-layer weight slabs, indexed by the (inner) layer grid axis so the
    # pipeline prefetches layer l+1 while layer l computes.
    in_specs += [pl.BlockSpec((1,) + w.shape[1:], lambda b, l: (l, 0, 0))
                 for w in weights]

    return pl.pallas_call(
        partial(bert_encoder_kernel, n_heads=n_heads),
        out_shape=jax.ShapeDtypeStruct((B, S, H), jnp.float32),
        grid=(nb, L),
        in_specs=in_specs,
        out_specs=pl.BlockSpec((block_b, S, H), lambda b, l: (b, 0, 0)),
        compiler_params=pltpu.CompilerParams(
            dimension_semantics=("parallel", "arbitrary"),
            vmem_limit_bytes=64 * 1024 * 1024),
    )(x, key_valid, *weights)


# ------------------------------ embeddings -------------------------------
# Token/segment gathers stay in plain JAX (irregular gathers are not a good fit
# for a rectangular-tile Pallas kernel at these sizes).

def bert_embedding(tokens, segments, tok_table, seg_table, hidden):
    B, S = tokens.shape
    te = jnp.take(tok_table, tokens, axis=0)                 # token embedding
    se = jnp.take(seg_table, segments, axis=0)               # segment embedding
    pos = jnp.arange(S, dtype=jnp.float32)[:, None]          # sinusoidal positional
    div = jnp.exp(jnp.arange(0, hidden, 2, dtype=jnp.float32)
                  * -(math.log(10000.0) / hidden))
    pe = jnp.zeros((S, hidden), jnp.float32)
    pe = pe.at[:, 0::2].set(jnp.sin(pos * div))
    pe = pe.at[:, 1::2].set(jnp.cos(pos * div))
    return te + se + pe[None, :, :]


# ---------------------------- parameter init -----------------------------

def init_bert_params(key, vocab_size, hidden, n_layers, n_heads):
    ffn = hidden * 4
    keys = jax.random.split(key, n_layers + 2)

    tok = jax.random.normal(keys[0], (vocab_size, hidden), jnp.float32) * 0.02
    tok = tok.at[0].set(0.0)                                  # padding_idx=0
    seg = jax.random.normal(keys[1], (3, hidden), jnp.float32) * 0.02
    seg = seg.at[0].set(0.0)                                  # padding_idx=0

    lin = lambda kk, fi, fo: jax.random.normal(kk, (fi, fo), jnp.float32) * 0.02
    vec = lambda kk, n: jax.random.normal(kk, (1, n), jnp.float32) * 0.02

    per = {n: [] for n in ('wq', 'bq', 'wk', 'bk', 'wv', 'bv', 'wo', 'bo',
                           'w1', 'b1', 'w2', 'b2',
                           'ln1a', 'ln1b', 'ln2a', 'ln2b')}
    for l in range(n_layers):
        k = jax.random.split(keys[2 + l], 12)
        per['wq'].append(lin(k[0], hidden, hidden)); per['bq'].append(vec(k[1], hidden))
        per['wk'].append(lin(k[2], hidden, hidden)); per['bk'].append(vec(k[3], hidden))
        per['wv'].append(lin(k[4], hidden, hidden)); per['bv'].append(vec(k[5], hidden))
        per['wo'].append(lin(k[6], hidden, hidden)); per['bo'].append(vec(k[7], hidden))
        per['w1'].append(lin(k[8], hidden, ffn));    per['b1'].append(vec(k[9], ffn))
        per['w2'].append(lin(k[10], ffn, hidden));   per['b2'].append(vec(k[11], hidden))
        per['ln1a'].append(jnp.ones((1, hidden), jnp.float32))
        per['ln1b'].append(jnp.zeros((1, hidden), jnp.float32))
        per['ln2a'].append(jnp.ones((1, hidden), jnp.float32))
        per['ln2b'].append(jnp.zeros((1, hidden), jnp.float32))

    params = {n: jnp.stack(v) for n, v in per.items()}        # leading layer dim
    for n in ('wq', 'wk', 'wv', 'wo', 'w1', 'w2'):            # MXU operands in bf16
        params[n] = params[n].astype(jnp.bfloat16)
    params['tok'] = tok
    params['seg'] = seg
    return params


# ------------------------------ full forward ------------------------------

def bert_forward(tokens, segments, params, hidden, n_heads, block_b=None):
    B, S = tokens.shape
    x = bert_embedding(tokens, segments, params['tok'], params['seg'], hidden)
    # per-key padding mask (B, 1, S): equivalent to
    # (tokens > 0).unsqueeze(1).repeat(1, S, 1) without the S x S materialization
    key_valid = (tokens > 0).astype(jnp.float32).reshape(B, 1, S)
    return bert_encoder(x, key_valid, params, n_heads, block_b=block_b)


# --------------------- pure-JAX reference (same dtypes) --------------------

def bert_encoder_ref(x, key_valid, params, n_heads):
    B, S, H = x.shape
    L = params['wq'].shape[0]
    d_k = H // n_heads
    f32, bf16 = jnp.float32, jnp.bfloat16
    keep = key_valid[:, None, :, :] > 0.0                     # (B, 1, 1, S)
    for l in range(L):
        xn = _layernorm_ref(x, params['ln1a'][l], params['ln1b'][l]).astype(bf16)
        q = jnp.dot(xn, params['wq'][l], preferred_element_type=f32) + params['bq'][l]
        k = jnp.dot(xn, params['wk'][l], preferred_element_type=f32) + params['bk'][l]
        v = jnp.dot(xn, params['wv'][l], preferred_element_type=f32) + params['bv'][l]
        q = q * (1.0 / math.sqrt(d_k))
        qh = q.reshape(B, S, n_heads, d_k).transpose(0, 2, 1, 3).astype(bf16)
        kh = k.reshape(B, S, n_heads, d_k).transpose(0, 2, 1, 3).astype(bf16)
        vh = v.reshape(B, S, n_heads, d_k).transpose(0, 2, 1, 3).astype(bf16)
        scores = jnp.einsum('bhqd,bhkd->bhqk', qh, kh, preferred_element_type=f32)
        scores = jnp.where(keep, scores, -1e9)
        p = jax.nn.softmax(scores, axis=-1)
        ctx = jnp.einsum('bhqk,bhkd->bhqd', p.astype(bf16), vh,
                         preferred_element_type=f32)
        ctx = ctx.transpose(0, 2, 1, 3).reshape(B, S, H)
        attn = jnp.dot(ctx.astype(bf16), params['wo'][l],
                       preferred_element_type=f32) + params['bo'][l]
        x1 = x + attn
        xn2 = _layernorm_ref(x1, params['ln2a'][l], params['ln2b'][l]).astype(bf16)
        hid = jnp.dot(xn2, params['w1'][l], preferred_element_type=f32) + params['b1'][l]
        hid = _gelu(hid).astype(bf16)
        ff = jnp.dot(hid, params['w2'][l], preferred_element_type=f32) + params['b2'][l]
        x = x1 + ff
    return x


def bert_forward_ref(tokens, segments, params, hidden, n_heads):
    B, S = tokens.shape
    x = bert_embedding(tokens, segments, params['tok'], params['seg'], hidden)
    key_valid = (tokens > 0).astype(jnp.float32).reshape(B, 1, S)
    return bert_encoder_ref(x, key_valid, params, n_heads)


# --------------------------------- main -----------------------------------

if __name__ == "__main__":
    vocab_size = 32
    hidden = 32
    n_layers = 2
    n_heads = 4
    seq = 8
    batch = 2

    key = jax.random.PRNGKey(0)
    kp, kx, ks = jax.random.split(key, 3)

    params = init_bert_params(kp, vocab_size, hidden, n_layers, n_heads)

    tokens = jax.random.randint(kx, (batch, seq), 0, vocab_size, dtype=jnp.int32)
    # guarantee at least one non-padding token per sequence (avoid all-masked rows)
    tokens = tokens.at[:, 0].set(jnp.maximum(tokens[:, 0], 1))
    segments = jax.random.randint(ks, (batch, seq), 0, 3, dtype=jnp.int32)

    out = bert_forward(tokens, segments, params, hidden, n_heads)
    out = jax.block_until_ready(out)

    assert out.shape == (batch, seq, hidden)
    assert bool(jnp.all(jnp.isfinite(out)))

    # correctness vs. pure-JAX reference (same bf16 casts; approx-reciprocal and
    # accumulation-order differences only)
    ref = jax.block_until_ready(bert_forward_ref(tokens, segments, params,
                                                 hidden, n_heads))
    max_err = float(jnp.max(jnp.abs(out - ref)))
    assert max_err < 5e-2, f"max abs err vs reference = {max_err}"

    print("KERNEL_OK")
</pallas_src>

<mosaic_0001>
module attributes {stable_mosaic.version = 11 : i64} {
  func.func @bert_encoder_kernel(%arg0: i32, %arg1: i32, %arg2: memref<1x8x32xf32, #tpu.memory_space<vmem>>, %arg3: memref<1x1x8xf32, #tpu.memory_space<vmem>>, %arg4: memref<1x32x32xbf16, #tpu.memory_space<vmem>>, %arg5: memref<1x1x32xf32, #tpu.memory_space<vmem>>, %arg6: memref<1x32x32xbf16, #tpu.memory_space<vmem>>, %arg7: memref<1x1x32xf32, #tpu.memory_space<vmem>>, %arg8: memref<1x32x32xbf16, #tpu.memory_space<vmem>>, %arg9: memref<1x1x32xf32, #tpu.memory_space<vmem>>, %arg10: memref<1x32x32xbf16, #tpu.memory_space<vmem>>, %arg11: memref<1x1x32xf32, #tpu.memory_space<vmem>>, %arg12: memref<1x32x128xbf16, #tpu.memory_space<vmem>>, %arg13: memref<1x1x128xf32, #tpu.memory_space<vmem>>, %arg14: memref<1x128x32xbf16, #tpu.memory_space<vmem>>, %arg15: memref<1x1x32xf32, #tpu.memory_space<vmem>>, %arg16: memref<1x1x32xf32, #tpu.memory_space<vmem>>, %arg17: memref<1x1x32xf32, #tpu.memory_space<vmem>>, %arg18: memref<1x1x32xf32, #tpu.memory_space<vmem>>, %arg19: memref<1x1x32xf32, #tpu.memory_space<vmem>>, %arg20: memref<1x8x32xf32, #tpu.memory_space<vmem>>) attributes {dimension_semantics = [#tpu.dimension_semantics<parallel>, #tpu.dimension_semantics<arbitrary>], iteration_bounds = array<i64: 2, 2>, scalar_prefetch = 0 : i64, scratch_operands = 0 : i64, tpu.core_type = #tpu.core_type<tc>, window_params = [{transform_indices = @transform_0, window_bounds = array<i64: 1, 8, 32>}, {transform_indices = @transform_1, window_bounds = array<i64: 1, 1, 8>}, {transform_indices = @transform_2, window_bounds = array<i64: 1, 32, 32>}, {transform_indices = @transform_3, window_bounds = array<i64: 1, 1, 32>}, {transform_indices = @transform_4, window_bounds = array<i64: 1, 32, 32>}, {transform_indices = @transform_5, window_bounds = array<i64: 1, 1, 32>}, {transform_indices = @transform_6, window_bounds = array<i64: 1, 32, 32>}, {transform_indices = @transform_7, window_bounds = array<i64: 1, 1, 32>}, {transform_indices = @transform_8, window_bounds = array<i64: 1, 32, 32>}, {transform_indices = @transform_9, window_bounds = array<i64: 1, 1, 32>}, {transform_indices = @transform_10, window_bounds = array<i64: 1, 32, 128>}, {transform_indices = @transform_11, window_bounds = array<i64: 1, 1, 128>}, {transform_indices = @transform_12, window_bounds = array<i64: 1, 128, 32>}, {transform_indices = @transform_13, window_bounds = array<i64: 1, 1, 32>}, {transform_indices = @transform_14, window_bounds = array<i64: 1, 1, 32>}, {transform_indices = @transform_15, window_bounds = array<i64: 1, 1, 32>}, {transform_indices = @transform_16, window_bounds = array<i64: 1, 1, 32>}, {transform_indices = @transform_17, window_bounds = array<i64: 1, 1, 32>}, {transform_indices = @transform_18, window_bounds = array<i64: 1, 8, 32>}]} {
    %c0_i32 = arith.constant 0 : i32
    %0 = arith.cmpi eq, %arg1, %c0_i32 : i32
    %1 = arith.extui %0 : i1 to i32
    %c0_i32_0 = arith.constant 0 : i32
    %2 = arith.cmpi ne, %1, %c0_i32_0 : i32
    scf.if %2 {
      %c0_83 = arith.constant 0 : index
      %c0_84 = arith.constant 0 : index
      %c0_85 = arith.constant 0 : index
      %159 = vector.load %arg2[%c0_83, %c0_84, %c0_85] : memref<1x8x32xf32, #tpu.memory_space<vmem>>, vector<1x8x32xf32>
      %c0_86 = arith.constant 0 : index
      %c0_87 = arith.constant 0 : index
      %c0_88 = arith.constant 0 : index
      %160 = vector.load %arg20[%c0_86, %c0_87, %c0_88] : memref<1x8x32xf32, #tpu.memory_space<vmem>>, vector<1x8x32xf32>
      tpu.vector_store %arg20[%c0_86, %c0_87, %c0_88], %159 {strides = array<i32>} : memref<1x8x32xf32, #tpu.memory_space<vmem>>, vector<1x8x32xf32>,
    } else {
    }
    %c0 = arith.constant 0 : index
    %c0_1 = arith.constant 0 : index
    %c0_2 = arith.constant 0 : index
    %3 = vector.load %arg20[%c0, %c0_1, %c0_2] : memref<1x8x32xf32, #tpu.memory_space<vmem>>, vector<1x8x32xf32>
    %4 = vector.shape_cast %3 : vector<1x8x32xf32> to vector<8x32xf32>
    %c0_3 = arith.constant 0 : index
    %c0_4 = arith.constant 0 : index
    %c0_5 = arith.constant 0 : index
    %5 = vector.load %arg3[%c0_3, %c0_4, %c0_5] : memref<1x1x8xf32, #tpu.memory_space<vmem>>, vector<1x1x8xf32>
    %cst = arith.constant 0.000000e+00 : f32
    %6 = vector.broadcast %cst : f32 to vector<1x1x8xf32>
    %7 = arith.cmpf ogt, %5, %6 : vector<1x1x8xf32>
    %c0_6 = arith.constant 0 : index
    %c0_7 = arith.constant 0 : index
    %c0_8 = arith.constant 0 : index
    %8 = vector.load %arg16[%c0_6, %c0_7, %c0_8] : memref<1x1x32xf32, #tpu.memory_space<vmem>>, vector<1x1x32xf32>
    %9 = vector.shape_cast %8 : vector<1x1x32xf32> to vector<1x32xf32>
    %c0_9 = arith.constant 0 : index
    %c0_10 = arith.constant 0 : index
    %c0_11 = arith.constant 0 : index
    %10 = vector.load %arg17[%c0_9, %c0_10, %c0_11] : memref<1x1x32xf32, #tpu.memory_space<vmem>>, vector<1x1x32xf32>
    %11 = vector.shape_cast %10 : vector<1x1x32xf32> to vector<1x32xf32>
    %cst_12 = arith.constant dense<0.000000e+00> : vector<8xf32>
    %12 = vector.multi_reduction <add>, %4, %cst_12 [1] : vector<8x32xf32> to vector<8xf32>
    %13 = vector.shape_cast %12 : vector<8xf32> to vector<8x1xf32>
    %cst_13 = arith.constant 3.200000e+01 : f32
    %14 = vector.broadcast %cst_13 : f32 to vector<8x1xf32>
    %15 = arith.divf %13, %14 : vector<8x1xf32>
    %16 = vector.broadcast %15 : vector<8x1xf32> to vector<8x32xf32>
    %17 = arith.subf %4, %16 : vector<8x32xf32>
    %18 = arith.mulf %17, %17 : vector<8x32xf32>
    %cst_14 = arith.constant dense<0.000000e+00> : vector<8xf32>
    %19 = vector.multi_reduction <add>, %18, %cst_14 [1] : vector<8x32xf32> to vector<8xf32>
    %20 = vector.shape_cast %19 : vector<8xf32> to vector<8x1xf32>
    %cst_15 = arith.constant 3.100000e+01 : f32
    %21 = vector.broadcast %cst_15 : f32 to vector<8x1xf32>
    %22 = arith.divf %20, %21 : vector<8x1xf32>
    %23 = math.sqrt %22 : vector<8x1xf32>
    %cst_16 = arith.constant 9.99999997E-7 : f32
    %24 = vector.broadcast %cst_16 : f32 to vector<8x1xf32>
    %25 = arith.addf %23, %24 : vector<8x1xf32>
    %26 = tpu.reciprocal %25 {approx = true} : vector<8x1xf32> -> vector<8x1xf32>
    %27 = vector.broadcast %15 : vector<8x1xf32> to vector<8x32xf32>
    %28 = arith.subf %4, %27 : vector<8x32xf32>
    %29 = vector.broadcast %9 : vector<1x32xf32> to vector<8x32xf32>
    %30 = arith.mulf %29, %28 : vector<8x32xf32>
    %31 = vector.broadcast %26 : vector<8x1xf32> to vector<8x32xf32>
    %32 = arith.mulf %30, %31 : vector<8x32xf32>
    %33 = vector.broadcast %11 : vector<1x32xf32> to vector<8x32xf32>
    %34 = arith.addf %32, %33 : vector<8x32xf32>
    %35 = arith.truncf %34 : vector<8x32xf32> to vector<8x32xbf16>
    %c0_17 = arith.constant 0 : index
    %c0_18 = arith.constant 0 : index
    %c0_19 = arith.constant 0 : index
    %36 = vector.load %arg4[%c0_17, %c0_18, %c0_19] : memref<1x32x32xbf16, #tpu.memory_space<vmem>>, vector<1x32x32xbf16>
    %37 = vector.shape_cast %36 : vector<1x32x32xbf16> to vector<32x32xbf16>
    %cst_20 = arith.constant dense<0.000000e+00> : vector<8x32xf32>
    %38 = tpu.matmul %35, %37, %cst_20 {dimension_numbers = #tpu.dot_dimension_numbers<[1], [0], [0], [1], [0, 0, 1, 1], [], []>} : vector<8x32xbf16>, vector<32x32xbf16>, vector<8x32xf32> -> vector<8x32xf32>
    %c0_21 = arith.constant 0 : index
    %c0_22 = arith.constant 0 : index
    %c0_23 = arith.constant 0 : index
    %39 = vector.load %arg5[%c0_21, %c0_22, %c0_23] : memref<1x1x32xf32, #tpu.memory_space<vmem>>, vector<1x1x32xf32>
    %40 = vector.shape_cast %39 : vector<1x1x32xf32> to vector<1x32xf32>
    %41 = vector.broadcast %40 : vector<1x32xf32> to vector<8x32xf32>
    %42 = arith.addf %38, %41 : vector<8x32xf32>
    %c0_24 = arith.constant 0 : index
    %c0_25 = arith.constant 0 : index
    %c0_26 = arith.constant 0 : index
    %43 = vector.load %arg6[%c0_24, %c0_25, %c0_26] : memref<1x32x32xbf16, #tpu.memory_space<vmem>>, vector<1x32x32xbf16>
    %44 = vector.shape_cast %43 : vector<1x32x32xbf16> to vector<32x32xbf16>
    %cst_27 = arith.constant dense<0.000000e+00> : vector<8x32xf32>
    %45 = tpu.matmul %35, %44, %cst_27 {dimension_numbers = #tpu.dot_dimension_numbers<[1], [0], [0], [1], [0, 0, 1, 1], [], []>} : vector<8x32xbf16>, vector<32x32xbf16>, vector<8x32xf32> -> vector<8x32xf32>
    %c0_28 = arith.constant 0 : index
    %c0_29 = arith.constant 0 : index
    %c0_30 = arith.constant 0 : index
    %46 = vector.load %arg7[%c0_28, %c0_29, %c0_30] : memref<1x1x32xf32, #tpu.memory_space<vmem>>, vector<1x1x32xf32>
    %47 = vector.shape_cast %46 : vector<1x1x32xf32> to vector<1x32xf32>
    %48 = vector.broadcast %47 : vector<1x32xf32> to vector<8x32xf32>
    %49 = arith.addf %45, %48 : vector<8x32xf32>
    %c0_31 = arith.constant 0 : index
    %c0_32 = arith.constant 0 : index
    %c0_33 = arith.constant 0 : index
    %50 = vector.load %arg8[%c0_31, %c0_32, %c0_33] : memref<1x32x32xbf16, #tpu.memory_space<vmem>>, vector<1x32x32xbf16>
    %51 = vector.shape_cast %50 : vector<1x32x32xbf16> to vector<32x32xbf16>
    %cst_34 = arith.constant dense<0.000000e+00> : vector<8x32xf32>
    %52 = tpu.matmul %35, %51, %cst_34 {dimension_numbers = #tpu.dot_dimension_numbers<[1], [0], [0], [1], [0, 0, 1, 1], [], []>} : vector<8x32xbf16>, vector<32x32xbf16>, vector<8x32xf32> -> vector<8x32xf32>
    %c0_35 = arith.constant 0 : index
    %c0_36 = arith.constant 0 : index
    %c0_37 = arith.constant 0 : index
    %53 = vector.load %arg9[%c0_35, %c0_36, %c0_37] : memref<1x1x32xf32, #tpu.memory_space<vmem>>, vector<1x1x32xf32>
    %54 = vector.shape_cast %53 : vector<1x1x32xf32> to vector<1x32xf32>
    %55 = vector.broadcast %54 : vector<1x32xf32> to vector<8x32xf32>
    %56 = arith.addf %52, %55 : vector<8x32xf32>
    %cst_38 = arith.constant 0.353553385 : f32
    %57 = vector.broadcast %cst_38 : f32 to vector<8x32xf32>
    %58 = arith.mulf %42, %57 : vector<8x32xf32>
    %59 = tpu.transpose %58, [1, 0] : vector<8x32xf32> -> vector<32x8xf32>
    %60 = vector.shape_cast %59 : vector<32x8xf32> to vector<4x8x8xf32>
    %61 = tpu.transpose %49, [1, 0] : vector<8x32xf32> -> vector<32x8xf32>
    %62 = vector.shape_cast %61 : vector<32x8xf32> to vector<4x8x8xf32>
    %63 = tpu.transpose %56, [1, 0] : vector<8x32xf32> -> vector<32x8xf32>
    %64 = vector.shape_cast %63 : vector<32x8xf32> to vector<4x8x8xf32>
    %65 = tpu.transpose %60, [0, 2, 1] : vector<4x8x8xf32> -> vector<4x8x8xf32>
    %66 = arith.truncf %65 : vector<4x8x8xf32> to vector<4x8x8xbf16>
    %67 = tpu.transpose %62, [0, 2, 1] : vector<4x8x8xf32> -> vector<4x8x8xf32>
    %68 = arith.truncf %67 : vector<4x8x8xf32> to vector<4x8x8xbf16>
    "tpu.trace_start"() <{level = 10 : i32, message = "nqd,nkd->nqk"}> : () -> ()
    %cst_39 = arith.constant dense<0.000000e+00> : vector<4x8x8xf32>
    %69 = tpu.matmul %66, %68, %cst_39 {dimension_numbers = #tpu.dot_dimension_numbers<[2], [2], [1], [1], [0, 0, 0, 1, 1, 1], [0], [0]>} : vector<4x8x8xbf16>, vector<4x8x8xbf16>, vector<4x8x8xf32> -> vector<4x8x8xf32>
    "tpu.trace_stop"() : () -> ()
    %70 = vector.shape_cast %7 : vector<1x1x8xi1> to vector<1x8xi1>
    %71 = vector.shape_cast %70 : vector<1x8xi1> to vector<1x1x8xi1>
    %cst_40 = arith.constant -1.000000e+09 : f32
    %72 = vector.shape_cast %71 : vector<1x1x8xi1> to vector<1x1x8xi1>
    %73 = vector.broadcast %72 : vector<1x1x8xi1> to vector<4x8x8xi1>
    %74 = vector.broadcast %cst_40 : f32 to vector<4x8x8xf32>
    %75 = arith.select %73, %69, %74 : vector<4x8x8xi1>, vector<4x8x8xf32>
    %cst_41 = arith.constant dense<0xFF800000> : vector<4x8xf32>
    %76 = vector.multi_reduction <maximumf>, %75, %cst_41 [2] : vector<4x8x8xf32> to vector<4x8xf32>
    %77 = vector.shape_cast %76 : vector<4x8xf32> to vector<4x8x1xf32>
    %78 = vector.broadcast %77 : vector<4x8x1xf32> to vector<4x8x8xf32>
    %79 = arith.subf %75, %78 : vector<4x8x8xf32>
    %80 = math.exp %79 : vector<4x8x8xf32>
    %cst_42 = arith.constant dense<0.000000e+00> : vector<4x8xf32>
    %81 = vector.multi_reduction <add>, %80, %cst_42 [2] : vector<4x8x8xf32> to vector<4x8xf32>
    %82 = vector.shape_cast %81 : vector<4x8xf32> to vector<4x8x1xf32>
    %83 = tpu.reciprocal %82 {approx = true} : vector<4x8x1xf32> -> vector<4x8x1xf32>
    %84 = vector.broadcast %83 : vector<4x8x1xf32> to vector<4x8x8xf32>
    %85 = arith.mulf %80, %84 : vector<4x8x8xf32>
    %86 = arith.truncf %64 : vector<4x8x8xf32> to vector<4x8x8xbf16>
    %87 = arith.truncf %85 : vector<4x8x8xf32> to vector<4x8x8xbf16>
    "tpu.trace_start"() <{level = 10 : i32, message = "ndk,nqk->ndq"}> : () -> ()
    %cst_43 = arith.constant dense<0.000000e+00> : vector<4x8x8xf32>
    %88 = tpu.matmul %86, %87, %cst_43 {dimension_numbers = #tpu.dot_dimension_numbers<[2], [2], [1], [1], [0, 0, 0, 1, 1, 1], [0], [0]>} : vector<4x8x8xbf16>, vector<4x8x8xbf16>, vector<4x8x8xf32> -> vector<4x8x8xf32>
    "tpu.trace_stop"() : () -> ()
    %89 = vector.shape_cast %88 : vector<4x8x8xf32> to vector<32x8xf32>
    %90 = tpu.transpose %89, [1, 0] : vector<32x8xf32> -> vector<8x32xf32>
    %91 = arith.truncf %90 : vector<8x32xf32> to vector<8x32xbf16>
    %c0_44 = arith.constant 0 : index
    %c0_45 = arith.constant 0 : index
    %c0_46 = arith.constant 0 : index
    %92 = vector.load %arg10[%c0_44, %c0_45, %c0_46] : memref<1x32x32xbf16, #tpu.memory_space<vmem>>, vector<1x32x32xbf16>
    %93 = vector.shape_cast %92 : vector<1x32x32xbf16> to vector<32x32xbf16>
    %cst_47 = arith.constant dense<0.000000e+00> : vector<8x32xf32>
    %94 = tpu.matmul %91, %93, %cst_47 {dimension_numbers = #tpu.dot_dimension_numbers<[1], [0], [0], [1], [0, 0, 1, 1], [], []>} : vector<8x32xbf16>, vector<32x32xbf16>, vector<8x32xf32> -> vector<8x32xf32>
    %c0_48 = arith.constant 0 : index
    %c0_49 = arith.constant 0 : index
    %c0_50 = arith.constant 0 : index
    %95 = vector.load %arg11[%c0_48, %c0_49, %c0_50] : memref<1x1x32xf32, #tpu.memory_space<vmem>>, vector<1x1x32xf32>
    %96 = vector.shape_cast %95 : vector<1x1x32xf32> to vector<1x32xf32>
    %97 = vector.broadcast %96 : vector<1x32xf32> to vector<8x32xf32>
    %98 = arith.addf %94, %97 : vector<8x32xf32>
    %99 = arith.addf %4, %98 : vector<8x32xf32>
    %c0_51 = arith.constant 0 : index
    %c0_52 = arith.constant 0 : index
    %c0_53 = arith.constant 0 : index
    %100 = vector.load %arg18[%c0_51, %c0_52, %c0_53] : memref<1x1x32xf32, #tpu.memory_space<vmem>>, vector<1x1x32xf32>
    %101 = vector.shape_cast %100 : vector<1x1x32xf32> to vector<1x32xf32>
    %c0_54 = arith.constant 0 : index
    %c0_55 = arith.constant 0 : index
    %c0_56 = arith.constant 0 : index
    %102 = vector.load %arg19[%c0_54, %c0_55, %c0_56] : memref<1x1x32xf32, #tpu.memory_space<vmem>>, vector<1x1x32xf32>
    %103 = vector.shape_cast %102 : vector<1x1x32xf32> to vector<1x32xf32>
    %cst_57 = arith.constant dense<0.000000e+00> : vector<8xf32>
    %104 = vector.multi_reduction <add>, %99, %cst_57 [1] : vector<8x32xf32> to vector<8xf32>
    %105 = vector.shape_cast %104 : vector<8xf32> to vector<8x1xf32>
    %cst_58 = arith.constant 3.200000e+01 : f32
    %106 = vector.broadcast %cst_58 : f32 to vector<8x1xf32>
    %107 = arith.divf %105, %106 : vector<8x1xf32>
    %108 = vector.broadcast %107 : vector<8x1xf32> to vector<8x32xf32>
    %109 = arith.subf %99, %108 : vector<8x32xf32>
    %110 = arith.mulf %109, %109 : vector<8x32xf32>
    %cst_59 = arith.constant dense<0.000000e+00> : vector<8xf32>
    %111 = vector.multi_reduction <add>, %110, %cst_59 [1] : vector<8x32xf32> to vector<8xf32>
    %112 = vector.shape_cast %111 : vector<8xf32> to vector<8x1xf32>
    %cst_60 = arith.constant 3.100000e+01 : f32
    %113 = vector.broadcast %cst_60 : f32 to vector<8x1xf32>
    %114 = arith.divf %112, %113 : vector<8x1xf32>
    %115 = math.sqrt %114 : vector<8x1xf32>
    %cst_61 = arith.constant 9.99999997E-7 : f32
    %116 = vector.broadcast %cst_61 : f32 to vector<8x1xf32>
    %117 = arith.addf %115, %116 : vector<8x1xf32>
    %118 = tpu.reciprocal %117 {approx = true} : vector<8x1xf32> -> vector<8x1xf32>
    %119 = vector.broadcast %107 : vector<8x1xf32> to vector<8x32xf32>
    %120 = arith.subf %99, %119 : vector<8x32xf32>
    %121 = vector.broadcast %101 : vector<1x32xf32> to vector<8x32xf32>
    %122 = arith.mulf %121, %120 : vector<8x32xf32>
    %123 = vector.broadcast %118 : vector<8x1xf32> to vector<8x32xf32>
    %124 = arith.mulf %122, %123 : vector<8x32xf32>
    %125 = vector.broadcast %103 : vector<1x32xf32> to vector<8x32xf32>
    %126 = arith.addf %124, %125 : vector<8x32xf32>
    %127 = arith.truncf %126 : vector<8x32xf32> to vector<8x32xbf16>
    %c0_62 = arith.constant 0 : index
    %c0_63 = arith.constant 0 : index
    %c0_64 = arith.constant 0 : index
    %128 = vector.load %arg12[%c0_62, %c0_63, %c0_64] : memref<1x32x128xbf16, #tpu.memory_space<vmem>>, vector<1x32x128xbf16>
    %129 = vector.shape_cast %128 : vector<1x32x128xbf16> to vector<32x128xbf16>
    %cst_65 = arith.constant dense<0.000000e+00> : vector<8x128xf32>
    %130 = tpu.matmul %127, %129, %cst_65 {dimension_numbers = #tpu.dot_dimension_numbers<[1], [0], [0], [1], [0, 0, 1, 1], [], []>} : vector<8x32xbf16>, vector<32x128xbf16>, vector<8x128xf32> -> vector<8x128xf32>
    %c0_66 = arith.constant 0 : index
    %c0_67 = arith.constant 0 : index
    %c0_68 = arith.constant 0 : index
    %131 = vector.load %arg13[%c0_66, %c0_67, %c0_68] : memref<1x1x128xf32, #tpu.memory_space<vmem>>, vector<1x1x128xf32>
    %132 = vector.shape_cast %131 : vector<1x1x128xf32> to vector<1x128xf32>
    %133 = vector.broadcast %132 : vector<1x128xf32> to vector<8x128xf32>
    %134 = arith.addf %130, %133 : vector<8x128xf32>
    %cst_69 = arith.constant 5.000000e-01 : f32
    %135 = vector.broadcast %cst_69 : f32 to vector<8x128xf32>
    %136 = arith.mulf %135, %134 : vector<8x128xf32>
    %cst_70 = arith.constant 4.471500e-02 : f32
    %137 = vector.broadcast %cst_70 : f32 to vector<8x128xf32>
    %138 = arith.mulf %137, %134 : vector<8x128xf32>
    %139 = arith.mulf %138, %134 : vector<8x128xf32>
    %140 = arith.mulf %139, %134 : vector<8x128xf32>
    %141 = arith.addf %134, %140 : vector<8x128xf32>
    %cst_71 = arith.constant 0.797884583 : f32
    %142 = vector.broadcast %cst_71 : f32 to vector<8x128xf32>
    %143 = arith.mulf %142, %141 : vector<8x128xf32>
    %144 = math.tanh %143 : vector<8x128xf32>
    %cst_72 = arith.constant 1.000000e+00 : f32
    %145 = vector.broadcast %cst_72 : f32 to vector<8x128xf32>
    %146 = arith.addf %145, %144 : vector<8x128xf32>
    %147 = arith.mulf %136, %146 : vector<8x128xf32>
    %148 = arith.truncf %147 : vector<8x128xf32> to vector<8x128xbf16>
    %c0_73 = arith.constant 0 : index
    %c0_74 = arith.constant 0 : index
    %c0_75 = arith.constant 0 : index
    %149 = vector.load %arg14[%c0_73, %c0_74, %c0_75] : memref<1x128x32xbf16, #tpu.memory_space<vmem>>, vector<1x128x32xbf16>
    %150 = vector.shape_cast %149 : vector<1x128x32xbf16> to vector<128x32xbf16>
    %cst_76 = arith.constant dense<0.000000e+00> : vector<8x32xf32>
    %151 = tpu.matmul %148, %150, %cst_76 {dimension_numbers = #tpu.dot_dimension_numbers<[1], [0], [0], [1], [0, 0, 1, 1], [], []>} : vector<8x128xbf16>, vector<128x32xbf16>, vector<8x32xf32> -> vector<8x32xf32>
    %c0_77 = arith.constant 0 : index
    %c0_78 = arith.constant 0 : index
    %c0_79 = arith.constant 0 : index
    %152 = vector.load %arg15[%c0_77, %c0_78, %c0_79] : memref<1x1x32xf32, #tpu.memory_space<vmem>>, vector<1x1x32xf32>
    %153 = vector.shape_cast %152 : vector<1x1x32xf32> to vector<1x32xf32>
    %154 = vector.broadcast %153 : vector<1x32xf32> to vector<8x32xf32>
    %155 = arith.addf %151, %154 : vector<8x32xf32>
    %156 = arith.addf %99, %155 : vector<8x32xf32>
    %157 = vector.shape_cast %156 : vector<8x32xf32> to vector<1x8x32xf32>
    %c0_80 = arith.constant 0 : index
    %c0_81 = arith.constant 0 : index
    %c0_82 = arith.constant 0 : index
    %158 = vector.load %arg20[%c0_80, %c0_81, %c0_82] : memref<1x8x32xf32, #tpu.memory_space<vmem>>, vector<1x8x32xf32>
    tpu.vector_store %arg20[%c0_80, %c0_81, %c0_82], %157 {strides = array<i32>} : memref<1x8x32xf32, #tpu.memory_space<vmem>>, vector<1x8x32xf32>,
    return
  }
  func.func @transform_0(%arg0: i32, %arg1: i32) -> (i32, i32, i32) {
    %c0_i32 = arith.constant 0 : i32
    %c0_i32_0 = arith.constant 0 : i32
    %c0_i32_1 = arith.constant 0 : i32
    return %arg0, %c0_i32, %c0_i32_0 : i32, i32, i32
  }
  func.func @transform_1(%arg0: i32, %arg1: i32) -> (i32, i32, i32) {
    %c0_i32 = arith.constant 0 : i32
    %c0_i32_0 = arith.constant 0 : i32
    %c0_i32_1 = arith.constant 0 : i32
    return %arg0, %c0_i32, %c0_i32_0 : i32, i32, i32
  }
  func.func @transform_2(%arg0: i32, %arg1: i32) -> (i32, i32, i32) {
    %c0_i32 = arith.constant 0 : i32
    %c0_i32_0 = arith.constant 0 : i32
    %c0_i32_1 = arith.constant 0 : i32
    return %arg1, %c0_i32, %c0_i32_0 : i32, i32, i32
  }
  func.func @transform_3(%arg0: i32, %arg1: i32) -> (i32, i32, i32) {
    %c0_i32 = arith.constant 0 : i32
    %c0_i32_0 = arith.constant 0 : i32
    %c0_i32_1 = arith.constant 0 : i32
    return %arg1, %c0_i32, %c0_i32_0 : i32, i32, i32
  }
  func.func @transform_4(%arg0: i32, %arg1: i32) -> (i32, i32, i32) {
    %c0_i32 = arith.constant 0 : i32
    %c0_i32_0 = arith.constant 0 : i32
    %c0_i32_1 = arith.constant 0 : i32
    return %arg1, %c0_i32, %c0_i32_0 : i32, i32, i32
  }
  func.func @transform_5(%arg0: i32, %arg1: i32) -> (i32, i32, i32) {
    %c0_i32 = arith.constant 0 : i32
    %c0_i32_0 = arith.constant 0 : i32
    %c0_i32_1 = arith.constant 0 : i32
    return %arg1, %c0_i32, %c0_i32_0 : i32, i32, i32
  }
  func.func @transform_6(%arg0: i32, %arg1: i32) -> (i32, i32, i32) {
    %c0_i32 = arith.constant 0 : i32
    %c0_i32_0 = arith.constant 0 : i32
    %c0_i32_1 = arith.constant 0 : i32
    return %arg1, %c0_i32, %c0_i32_0 : i32, i32, i32
  }
  func.func @transform_7(%arg0: i32, %arg1: i32) -> (i32, i32, i32) {
    %c0_i32 = arith.constant 0 : i32
    %c0_i32_0 = arith.constant 0 : i32
    %c0_i32_1 = arith.constant 0 : i32
    return %arg1, %c0_i32, %c0_i32_0 : i32, i32, i32
  }
  func.func @transform_8(%arg0: i32, %arg1: i32) -> (i32, i32, i32) {
    %c0_i32 = arith.constant 0 : i32
    %c0_i32_0 = arith.constant 0 : i32
    %c0_i32_1 = arith.constant 0 : i32
    return %arg1, %c0_i32, %c0_i32_0 : i32, i32, i32
  }
  func.func @transform_9(%arg0: i32, %arg1: i32) -> (i32, i32, i32) {
    %c0_i32 = arith.constant 0 : i32
    %c0_i32_0 = arith.constant 0 : i32
    %c0_i32_1 = arith.constant 0 : i32
    return %arg1, %c0_i32, %c0_i32_0 : i32, i32, i32
  }
  func.func @transform_10(%arg0: i32, %arg1: i32) -> (i32, i32, i32) {
    %c0_i32 = arith.constant 0 : i32
    %c0_i32_0 = arith.constant 0 : i32
    %c0_i32_1 = arith.constant 0 : i32
    return %arg1, %c0_i32, %c0_i32_0 : i32, i32, i32
  }
  func.func @transform_11(%arg0: i32, %arg1: i32) -> (i32, i32, i32) {
    %c0_i32 = arith.constant 0 : i32
    %c0_i32_0 = arith.constant 0 : i32
    %c0_i32_1 = arith.constant 0 : i32
    return %arg1, %c0_i32, %c0_i32_0 : i32, i32, i32
  }
  func.func @transform_12(%arg0: i32, %arg1: i32) -> (i32, i32, i32) {
    %c0_i32 = arith.constant 0 : i32
    %c0_i32_0 = arith.constant 0 : i32
    %c0_i32_1 = arith.constant 0 : i32
    return %arg1, %c0_i32, %c0_i32_0 : i32, i32, i32
  }
  func.func @transform_13(%arg0: i32, %arg1: i32) -> (i32, i32, i32) {
    %c0_i32 = arith.constant 0 : i32
    %c0_i32_0 = arith.constant 0 : i32
    %c0_i32_1 = arith.constant 0 : i32
    return %arg1, %c0_i32, %c0_i32_0 : i32, i32, i32
  }
  func.func @transform_14(%arg0: i32, %arg1: i32) -> (i32, i32, i32) {
    %c0_i32 = arith.constant 0 : i32
    %c0_i32_0 = arith.constant 0 : i32
    %c0_i32_1 = arith.constant 0 : i32
    return %arg1, %c0_i32, %c0_i32_0 : i32, i32, i32
  }
  func.func @transform_15(%arg0: i32, %arg1: i32) -> (i32, i32, i32) {
    %c0_i32 = arith.constant 0 : i32
    %c0_i32_0 = arith.constant 0 : i32
    %c0_i32_1 = arith.constant 0 : i32
    return %arg1, %c0_i32, %c0_i32_0 : i32, i32, i32
  }
  func.func @transform_16(%arg0: i32, %arg1: i32) -> (i32, i32, i32) {
    %c0_i32 = arith.constant 0 : i32
    %c0_i32_0 = arith.constant 0 : i32
    %c0_i32_1 = arith.constant 0 : i32
    return %arg1, %c0_i32, %c0_i32_0 : i32, i32, i32
  }
  func.func @transform_17(%arg0: i32, %arg1: i32) -> (i32, i32, i32) {
    %c0_i32 = arith.constant 0 : i32
    %c0_i32_0 = arith.constant 0 : i32
    %c0_i32_1 = arith.constant 0 : i32
    return %arg1, %c0_i32, %c0_i32_0 : i32, i32, i32
  }
  func.func @transform_18(%arg0: i32, %arg1: i32) -> (i32, i32, i32) {
    %c0_i32 = arith.constant 0 : i32
    %c0_i32_0 = arith.constant 0 : i32
    %c0_i32_1 = arith.constant 0 : i32
    return %arg0, %c0_i32, %c0_i32_0 : i32, i32, i32
  }
}

</mosaic_0001>

<llo_original>
// kernel: tpu_custom_call.1
$region0: #{tpu_custom_call.1}
  #allocation0 [shape = 'u32[]', space=smem, size = 0x4, offset = 0x4, fixed_abs, tag = 'smem constant byte address 0x4 - core index']
  #allocation1 [shape = 'u32[144,128]{1,0:T(1,128)}', space=vmem, size = 0x12000, scoped, tag = 'internal scratch']
  %s0 = inlined_call_operand.hbm [shape: f32[2,8,32], index: 0, kind: input, shape index: {}]
  %s1 = inlined_call_operand.hbm [shape: f32[2,1,8], index: 1, kind: input, shape index: {}]
  %s2 = inlined_call_operand.vmem [shape: bf16[2,32,32], index: 2, kind: input, shape index: {}]
  %s3 = inlined_call_operand.vmem [shape: f32[2,1,32], index: 3, kind: input, shape index: {}]
  %s4 = inlined_call_operand.vmem [shape: bf16[2,32,32], index: 4, kind: input, shape index: {}]
  %s5 = inlined_call_operand.vmem [shape: f32[2,1,32], index: 5, kind: input, shape index: {}]
  %s6 = inlined_call_operand.vmem [shape: bf16[2,32,32], index: 6, kind: input, shape index: {}]
  %s7 = inlined_call_operand.vmem [shape: f32[2,1,32], index: 7, kind: input, shape index: {}]
  %s8 = inlined_call_operand.vmem [shape: bf16[2,32,32], index: 8, kind: input, shape index: {}]
  %s9 = inlined_call_operand.vmem [shape: f32[2,1,32], index: 9, kind: input, shape index: {}]
  %s10 = inlined_call_operand.vmem [shape: bf16[2,32,128], index: 10, kind: input, shape index: {}]
  %s11 = inlined_call_operand.vmem [shape: f32[2,1,128], index: 11, kind: input, shape index: {}]
  %s12 = inlined_call_operand.vmem [shape: bf16[2,128,32], index: 12, kind: input, shape index: {}]
  %s13 = inlined_call_operand.vmem [shape: f32[2,1,32], index: 13, kind: input, shape index: {}]
  %s14 = inlined_call_operand.vmem [shape: f32[2,1,32], index: 14, kind: input, shape index: {}]
  %s15 = inlined_call_operand.vmem [shape: f32[2,1,32], index: 15, kind: input, shape index: {}]
  %s16 = inlined_call_operand.vmem [shape: f32[2,1,32], index: 16, kind: input, shape index: {}]
  %s17 = inlined_call_operand.vmem [shape: f32[2,1,32], index: 17, kind: input, shape index: {}]
  %s18 = inlined_call_operand.hbm [shape: f32[2,8,32], index: 18, kind: output, shape index: {}]
  %s19 = sld [smem:[#allocation0]]
  $region117: #{tpu_custom_call.1} parent=0
    _
  %s21 = ssub.s32 1, %s19
  %s22 = scalar_select 0, %s21, %s19
  $region1: #{tpu_custom_call.1} parent=0
    #allocation2 [shape = 'u8[8192]{0}', space=vmem, size = 0x2000, scoped, tag = 'input window, operand 0']
    #allocation3 [shape = 's32[2]{0}', space=sflag, size = 0x8, scoped, tag = 'scoped memory for tpu_custom_call.1']
    #allocation4 [shape = 's32[2]{0}', space=sflag, size = 0x8, scoped, tag = 'scoped memory for tpu_custom_call.1']
    #allocation5 [shape = 'u8[1024]{0}', space=vmem, size = 0x400, scoped, tag = 'input window, operand 1']
    #allocation6 [shape = 's32[2]{0}', space=sflag, size = 0x8, scoped, tag = 'scoped memory for tpu_custom_call.1']
    #allocation7 [shape = 'u8[8192]{0}', space=vmem, size = 0x2000, scoped, tag = 'output window, operand 0']
    %23 = vsyncpa [#allocation3], 0
    %s24 = scalar_lea.sflag [#allocation3], 1
    %25 = vsyncpa %s24, 0
    %26 = vsyncpa [#allocation6], 0
    %s27 = scalar_lea.sflag [#allocation6], 1
    %28 = vsyncpa %s27, 0
    %29 = vsyncpa [#allocation4], 0
    %s30 = scalar_lea.sflag [#allocation4], 1
    %31 = vsyncpa %s30, 0
    loop: start=0, step=1, limit=6
    $region2: #{tpu_custom_call.1} parent=1 // loop_pre_header
      _
    $region3: #{tpu_custom_call.1} parent=1 // loop_header
      %s33 = sphi 0, %s37
      %p34 = scmp.ge.s32.totalorder %s33, 6
      %s40 = sphi 0, %s52
      %s41 = sphi 0, %s48
      %s42 = sphi 0, %s40
      %s43 = sphi 0, %s41
      %s44 = sphi 0, %s42
      %s45 = sphi 0, %s43
      %s55 = sphi 0, %s57
      %s58 = sphi 0, %s55
      %s59 = sphi 0, %s58
      %s75 = sphi 0, %s59
      %s81 = sphi 0, %s83
      %s84 = sphi 0, %s81
      %s85 = sphi 0, %s84
      %s101 = sphi 0, %s85
      %s107 = sphi 0, %s109
      %s110 = sphi 0, %s107
      %s111 = sphi 0, %s110
      %s127 = sphi 0, %s111
      %s133 = sphi 0, %s135
      %s136 = sphi 0, %s133
      %s137 = sphi 0, %s136
      %s153 = sphi 0, %s137
      %s159 = sphi 0, %s161
      %s162 = sphi 0, %s159
      %s163 = sphi 0, %s162
      %s179 = sphi 0, %s163
      %s185 = sphi 0, %s187
      %s188 = sphi 0, %s185
      %s189 = sphi 0, %s188
      %s205 = sphi 0, %s189
      %s211 = sphi 0, %s213
      %s214 = sphi 0, %s211
      %s215 = sphi 0, %s214
      %s231 = sphi 0, %s215
      %s237 = sphi 0, %s239
      %s240 = sphi 0, %s237
      %s241 = sphi 0, %s240
      %s257 = sphi 0, %s241
      %s263 = sphi 0, %s265
      %s266 = sphi 0, %s263
      %s267 = sphi 0, %s266
      %s283 = sphi 0, %s267
      %s289 = sphi 0, %s291
      %s292 = sphi 0, %s289
      %s293 = sphi 0, %s292
      %s309 = sphi 0, %s293
      %s315 = sphi 0, %s317
      %s318 = sphi 0, %s315
      %s319 = sphi 0, %s318
      %s335 = sphi 0, %s319
      %s341 = sphi 0, %s343
      %s344 = sphi 0, %s341
      %s345 = sphi 0, %s344
      %s361 = sphi 0, %s345
      %s367 = sphi 0, %s369
      %s370 = sphi 0, %s367
      %s371 = sphi 0, %s370
      %s387 = sphi 0, %s371
      %s393 = sphi 0, %s395
      %s396 = sphi 0, %s393
      %s397 = sphi 0, %s396
      %s413 = sphi 0, %s397
      %s419 = sphi 0, %s421
      %s422 = sphi 0, %s419
      %s423 = sphi 0, %s422
      %s439 = sphi 0, %s423
      %s445 = sphi 0, %s447
      %s448 = sphi 0, %s445
      %s449 = sphi 0, %s448
      %s465 = sphi 0, %s449
      %s471 = sphi 0, %s473
      %s474 = sphi 0, %s471
      %s475 = sphi 0, %s474
      %s491 = sphi 0, %s475
      %s497 = sphi 0, %s499
      %s500 = sphi 0, %s497
      %s501 = sphi 0, %s500
      %s517 = sphi 0, %s501
      %s523 = sphi 0, %s525
      %s526 = sphi 0, %s523
      %s527 = sphi 0, %s526
      %s543 = sphi 0, %s527
    $region4: #{tpu_custom_call.1} parent=1 // loop_header_branch
      %36 = sbr.rel (%p34) target = $region8
    $region5: #{tpu_custom_call.1} parent=1 // loop_body
      %s38 = ssub.s32 %s33, 1
      %s39 = ssub.s32 %s33, 2
      %s46 = sadd.s32 1, %s41
      %p47 = scmp.ge.s32.totalorder %s46, 2
      %s48 = scalar_select %p47, 0, %s46
      %s49 = sadd.s32 1, %s40
      %s50 = scalar_select %p47, %s49, %s40
      %p51 = scmp.ge.s32.totalorder %s50, 2
      %s52 = scalar_select %p51, 0, %s50
      %s53 = ssub.s32 %s40, %s52
      %p54 = scmp.eq.s32.totalorder %s53, 0
      %s56 = sadd.s32 %s55, 1
      %s57 = scalar_select %p54, %s55, %s56
      %p60 = pneg %p54
      %p61 = scmp.eq.s32.totalorder %s33, 3
      %p62 = por %p60, %p61
      %p63 = scmp.ne.s32.totalorder %s55, %s58
      %p64 = scmp.eq.s32.totalorder %s33, 0
      %p65 = por %p63, %p64
      %p66 = scmp.ne.s32.totalorder %s55, %s58
      %p67 = scmp.eq.s32.totalorder %s38, 3
      %p68 = por %p66, %p67
      %p69 = scmp.ne.s32.totalorder %s58, %s59
      %p70 = scmp.eq.s32.totalorder %s38, 0
      %p71 = por %p69, %p70
      %p72 = scmp.ne.s32.totalorder %s58, %s59
      %p73 = scmp.eq.s32.totalorder %s39, 3
      %p74 = por %p72, %p73
      %p76 = scmp.ne.s32.totalorder %s59, %s75
      %p77 = scmp.eq.s32.totalorder %s39, 0
      %p78 = por %p76, %p77
      %s79 = ssub.s32 %s40, %s52
      %p80 = scmp.eq.s32.totalorder %s79, 0
      %s82 = sadd.s32 %s81, 1
      %s83 = scalar_select %p80, %s81, %s82
      %p86 = pneg %p80
      %p87 = scmp.eq.s32.totalorder %s33, 3
      %p88 = por %p86, %p87
      %p89 = scmp.ne.s32.totalorder %s81, %s84
      %p90 = scmp.eq.s32.totalorder %s33, 0
      %p91 = por %p89, %p90
      %p92 = scmp.ne.s32.totalorder %s81, %s84
      %p93 = scmp.eq.s32.totalorder %s38, 3
      %p94 = por %p92, %p93
      %p95 = scmp.ne.s32.totalorder %s84, %s85
      %p96 = scmp.eq.s32.totalorder %s38, 0
      %p97 = por %p95, %p96
      %p98 = scmp.ne.s32.totalorder %s84, %s85
      %p99 = scmp.eq.s32.totalorder %s39, 3
      %p100 = por %p98, %p99
      %p102 = scmp.ne.s32.totalorder %s85, %s101
      %p103 = scmp.eq.s32.totalorder %s39, 0
      %p104 = por %p102, %p103
      %s105 = ssub.s32 %s41, %s48
      %p106 = scmp.eq.s32.totalorder %s105, 0
      %s108 = sadd.s32 %s107, 1
      %s109 = scalar_select %p106, %s107, %s108
      %p112 = pneg %p106
      %p113 = scmp.eq.s32.totalorder %s33, 3
      %p114 = por %p112, %p113
      %p115 = scmp.ne.s32.totalorder %s107, %s110
      %p116 = scmp.eq.s32.totalorder %s33, 0
      %p117 = por %p115, %p116
      %p118 = scmp.ne.s32.totalorder %s107, %s110
      %p119 = scmp.eq.s32.totalorder %s38, 3
      %p120 = por %p118, %p119
      %p121 = scmp.ne.s32.totalorder %s110, %s111
      %p122 = scmp.eq.s32.totalorder %s38, 0
      %p123 = por %p121, %p122
      %p124 = scmp.ne.s32.totalorder %s110, %s111
      %p125 = scmp.eq.s32.totalorder %s39, 3
      %p126 = por %p124, %p125
      %p128 = scmp.ne.s32.totalorder %s111, %s127
      %p129 = scmp.eq.s32.totalorder %s39, 0
      %p130 = por %p128, %p129
      %s131 = ssub.s32 %s41, %s48
      %p132 = scmp.eq.s32.totalorder %s131, 0
      %s134 = sadd.s32 %s133, 1
      %s135 = scalar_select %p132, %s133, %s134
      %p138 = pneg %p132
      %p139 = scmp.eq.s32.totalorder %s33, 3
      %p140 = por %p138, %p139
      %p141 = scmp.ne.s32.totalorder %s133, %s136
      %p142 = scmp.eq.s32.totalorder %s33, 0
      %p143 = por %p141, %p142
      %p144 = scmp.ne.s32.totalorder %s133, %s136
      %p145 = scmp.eq.s32.totalorder %s38, 3
      %p146 = por %p144, %p145
      %p147 = scmp.ne.s32.totalorder %s136, %s137
      %p148 = scmp.eq.s32.totalorder %s38, 0
      %p149 = por %p147, %p148
      %p150 = scmp.ne.s32.totalorder %s136, %s137
      %p151 = scmp.eq.s32.totalorder %s39, 3
      %p152 = por %p150, %p151
      %p154 = scmp.ne.s32.totalorder %s137, %s153
      %p155 = scmp.eq.s32.totalorder %s39, 0
      %p156 = por %p154, %p155
      %s157 = ssub.s32 %s41, %s48
      %p158 = scmp.eq.s32.totalorder %s157, 0
      %s160 = sadd.s32 %s159, 1
      %s161 = scalar_select %p158, %s159, %s160
      %p164 = pneg %p158
      %p165 = scmp.eq.s32.totalorder %s33, 3
      %p166 = por %p164, %p165
      %p167 = scmp.ne.s32.totalorder %s159, %s162
      %p168 = scmp.eq.s32.totalorder %s33, 0
      %p169 = por %p167, %p168
      %p170 = scmp.ne.s32.totalorder %s159, %s162
      %p171 = scmp.eq.s32.totalorder %s38, 3
      %p172 = por %p170, %p171
      %p173 = scmp.ne.s32.totalorder %s162, %s163
      %p174 = scmp.eq.s32.totalorder %s38, 0
      %p175 = por %p173, %p174
      %p176 = scmp.ne.s32.totalorder %s162, %s163
      %p177 = scmp.eq.s32.totalorder %s39, 3
      %p178 = por %p176, %p177
      %p180 = scmp.ne.s32.totalorder %s163, %s179
      %p181 = scmp.eq.s32.totalorder %s39, 0
      %p182 = por %p180, %p181
      %s183 = ssub.s32 %s41, %s48
      %p184 = scmp.eq.s32.totalorder %s183, 0
      %s186 = sadd.s32 %s185, 1
      %s187 = scalar_select %p184, %s185, %s186
      %p190 = pneg %p184
      %p191 = scmp.eq.s32.totalorder %s33, 3
      %p192 = por %p190, %p191
      %p193 = scmp.ne.s32.totalorder %s185, %s188
      %p194 = scmp.eq.s32.totalorder %s33, 0
      %p195 = por %p193, %p194
      %p196 = scmp.ne.s32.totalorder %s185, %s188
      %p197 = scmp.eq.s32.totalorder %s38, 3
      %p198 = por %p196, %p197
      %p199 = scmp.ne.s32.totalorder %s188, %s189
      %p200 = scmp.eq.s32.totalorder %s38, 0
      %p201 = por %p199, %p200
      %p202 = scmp.ne.s32.totalorder %s188, %s189
      %p203 = scmp.eq.s32.totalorder %s39, 3
      %p204 = por %p202, %p203
      %p206 = scmp.ne.s32.totalorder %s189, %s205
      %p207 = scmp.eq.s32.totalorder %s39, 0
      %p208 = por %p206, %p207
      %s209 = ssub.s32 %s41, %s48
      %p210 = scmp.eq.s32.totalorder %s209, 0
      %s212 = sadd.s32 %s211, 1
      %s213 = scalar_select %p210, %s211, %s212
      %p216 = pneg %p210
      %p217 = scmp.eq.s32.totalorder %s33, 3
      %p218 = por %p216, %p217
      %p219 = scmp.ne.s32.totalorder %s211, %s214
      %p220 = scmp.eq.s32.totalorder %s33, 0
      %p221 = por %p219, %p220
      %p222 = scmp.ne.s32.totalorder %s211, %s214
      %p223 = scmp.eq.s32.totalorder %s38, 3
      %p224 = por %p222, %p223
      %p225 = scmp.ne.s32.totalorder %s214, %s215
      %p226 = scmp.eq.s32.totalorder %s38, 0
      %p227 = por %p225, %p226
      %p228 = scmp.ne.s32.totalorder %s214, %s215
      %p229 = scmp.eq.s32.totalorder %s39, 3
      %p230 = por %p228, %p229
      %p232 = scmp.ne.s32.totalorder %s215, %s231
      %p233 = scmp.eq.s32.totalorder %s39, 0
      %p234 = por %p232, %p233
      %s235 = ssub.s32 %s41, %s48
      %p236 = scmp.eq.s32.totalorder %s235, 0
      %s238 = sadd.s32 %s237, 1
      %s239 = scalar_select %p236, %s237, %s238
      %p242 = pneg %p236
      %p243 = scmp.eq.s32.totalorder %s33, 3
      %p244 = por %p242, %p243
      %p245 = scmp.ne.s32.totalorder %s237, %s240
      %p246 = scmp.eq.s32.totalorder %s33, 0
      %p247 = por %p245, %p246
      %p248 = scmp.ne.s32.totalorder %s237, %s240
      %p249 = scmp.eq.s32.totalorder %s38, 3
      %p250 = por %p248, %p249
      %p251 = scmp.ne.s32.totalorder %s240, %s241
      %p252 = scmp.eq.s32.totalorder %s38, 0
      %p253 = por %p251, %p252
      %p254 = scmp.ne.s32.totalorder %s240, %s241
      %p255 = scmp.eq.s32.totalorder %s39, 3
      %p256 = por %p254, %p255
      %p258 = scmp.ne.s32.totalorder %s241, %s257
      %p259 = scmp.eq.s32.totalorder %s39, 0
      %p260 = por %p258, %p259
      %s261 = ssub.s32 %s41, %s48
      %p262 = scmp.eq.s32.totalorder %s261, 0
      %s264 = sadd.s32 %s263, 1
      %s265 = scalar_select %p262, %s263, %s264
      %p268 = pneg %p262
      %p269 = scmp.eq.s32.totalorder %s33, 3
      %p270 = por %p268, %p269
      %p271 = scmp.ne.s32.totalorder %s263, %s266
      %p272 = scmp.eq.s32.totalorder %s33, 0
      %p273 = por %p271, %p272
      %p274 = scmp.ne.s32.totalorder %s263, %s266
      %p275 = scmp.eq.s32.totalorder %s38, 3
      %p276 = por %p274, %p275
      %p277 = scmp.ne.s32.totalorder %s266, %s267
      %p278 = scmp.eq.s32.totalorder %s38, 0
      %p279 = por %p277, %p278
      %p280 = scmp.ne.s32.totalorder %s266, %s267
      %p281 = scmp.eq.s32.totalorder %s39, 3
      %p282 = por %p280, %p281
      %p284 = scmp.ne.s32.totalorder %s267, %s283
      %p285 = scmp.eq.s32.totalorder %s39, 0
      %p286 = por %p284, %p285
      %s287 = ssub.s32 %s41, %s48
      %p288 = scmp.eq.s32.totalorder %s287, 0
      %s290 = sadd.s32 %s289, 1
      %s291 = scalar_select %p288, %s289, %s290
      %p294 = pneg %p288
      %p295 = scmp.eq.s32.totalorder %s33, 3
      %p296 = por %p294, %p295
      %p297 = scmp.ne.s32.totalorder %s289, %s292
      %p298 = scmp.eq.s32.totalorder %s33, 0
      %p299 = por %p297, %p298
      %p300 = scmp.ne.s32.totalorder %s289, %s292
      %p301 = scmp.eq.s32.totalorder %s38, 3
      %p302 = por %p300, %p301
      %p303 = scmp.ne.s32.totalorder %s292, %s293
      %p304 = scmp.eq.s32.totalorder %s38, 0
      %p305 = por %p303, %p304
      %p306 = scmp.ne.s32.totalorder %s292, %s293
      %p307 = scmp.eq.s32.totalorder %s39, 3
      %p308 = por %p306, %p307
      %p310 = scmp.ne.s32.totalorder %s293, %s309
      %p311 = scmp.eq.s32.totalorder %s39, 0
      %p312 = por %p310, %p311
      %s313 = ssub.s32 %s41, %s48
      %p314 = scmp.eq.s32.totalorder %s313, 0
      %s316 = sadd.s32 %s315, 1
      %s317 = scalar_select %p314, %s315, %s316
      %p320 = pneg %p314
      %p321 = scmp.eq.s32.totalorder %s33, 3
      %p322 = por %p320, %p321
      %p323 = scmp.ne.s32.totalorder %s315, %s318
      %p324 = scmp.eq.s32.totalorder %s33, 0
      %p325 = por %p323, %p324
      %p326 = scmp.ne.s32.totalorder %s315, %s318
      %p327 = scmp.eq.s32.totalorder %s38, 3
      %p328 = por %p326, %p327
      %p329 = scmp.ne.s32.totalorder %s318, %s319
      %p330 = scmp.eq.s32.totalorder %s38, 0
      %p331 = por %p329, %p330
      %p332 = scmp.ne.s32.totalorder %s318, %s319
      %p333 = scmp.eq.s32.totalorder %s39, 3
      %p334 = por %p332, %p333
      %p336 = scmp.ne.s32.totalorder %s319, %s335
      %p337 = scmp.eq.s32.totalorder %s39, 0
      %p338 = por %p336, %p337
      %s339 = ssub.s32 %s41, %s48
      %p340 = scmp.eq.s32.totalorder %s339, 0
      %s342 = sadd.s32 %s341, 1
      %s343 = scalar_select %p340, %s341, %s342
      %p346 = pneg %p340
      %p347 = scmp.eq.s32.totalorder %s33, 3
      %p348 = por %p346, %p347
      %p349 = scmp.ne.s32.totalorder %s341, %s344
      %p350 = scmp.eq.s32.totalorder %s33, 0
      %p351 = por %p349, %p350
      %p352 = scmp.ne.s32.totalorder %s341, %s344
      %p353 = scmp.eq.s32.totalorder %s38, 3
      %p354 = por %p352, %p353
      %p355 = scmp.ne.s32.totalorder %s344, %s345
      %p356 = scmp.eq.s32.totalorder %s38, 0
      %p357 = por %p355, %p356
      %p358 = scmp.ne.s32.totalorder %s344, %s345
      %p359 = scmp.eq.s32.totalorder %s39, 3
      %p360 = por %p358, %p359
      %p362 = scmp.ne.s32.totalorder %s345, %s361
      %p363 = scmp.eq.s32.totalorder %s39, 0
      %p364 = por %p362, %p363
      %s365 = ssub.s32 %s41, %s48
      %p366 = scmp.eq.s32.totalorder %s365, 0
      %s368 = sadd.s32 %s367, 1
      %s369 = scalar_select %p366, %s367, %s368
      %p372 = pneg %p366
      %p373 = scmp.eq.s32.totalorder %s33, 3
      %p374 = por %p372, %p373
      %p375 = scmp.ne.s32.totalorder %s367, %s370
      %p376 = scmp.eq.s32.totalorder %s33, 0
      %p377 = por %p375, %p376
      %p378 = scmp.ne.s32.totalorder %s367, %s370
      %p379 = scmp.eq.s32.totalorder %s38, 3
      %p380 = por %p378, %p379
      %p381 = scmp.ne.s32.totalorder %s370, %s371
      %p382 = scmp.eq.s32.totalorder %s38, 0
      %p383 = por %p381, %p382
      %p384 = scmp.ne.s32.totalorder %s370, %s371
      %p385 = scmp.eq.s32.totalorder %s39, 3
      %p386 = por %p384, %p385
      %p388 = scmp.ne.s32.totalorder %s371, %s387
      %p389 = scmp.eq.s32.totalorder %s39, 0
      %p390 = por %p388, %p389
      %s391 = ssub.s32 %s41, %s48
      %p392 = scmp.eq.s32.totalorder %s391, 0
      %s394 = sadd.s32 %s393, 1
      %s395 = scalar_select %p392, %s393, %s394
      %p398 = pneg %p392
      %p399 = scmp.eq.s32.totalorder %s33, 3
      %p400 = por %p398, %p399
      %p401 = scmp.ne.s32.totalorder %s393, %s396
      %p402 = scmp.eq.s32.totalorder %s33, 0
      %p403 = por %p401, %p402
      %p404 = scmp.ne.s32.totalorder %s393, %s396
      %p405 = scmp.eq.s32.totalorder %s38, 3
      %p406 = por %p404, %p405
      %p407 = scmp.ne.s32.totalorder %s396, %s397
      %p408 = scmp.eq.s32.totalorder %s38, 0
      %p409 = por %p407, %p408
      %p410 = scmp.ne.s32.totalorder %s396, %s397
      %p411 = scmp.eq.s32.totalorder %s39, 3
      %p412 = por %p410, %p411
      %p414 = scmp.ne.s32.totalorder %s397, %s413
      %p415 = scmp.eq.s32.totalorder %s39, 0
      %p416 = por %p414, %p415
      %s417 = ssub.s32 %s41, %s48
      %p418 = scmp.eq.s32.totalorder %s417, 0
      %s420 = sadd.s32 %s419, 1
      %s421 = scalar_select %p418, %s419, %s420
      %p424 = pneg %p418
      %p425 = scmp.eq.s32.totalorder %s33, 3
      %p426 = por %p424, %p425
      %p427 = scmp.ne.s32.totalorder %s419, %s422
      %p428 = scmp.eq.s32.totalorder %s33, 0
      %p429 = por %p427, %p428
      %p430 = scmp.ne.s32.totalorder %s419, %s422
      %p431 = scmp.eq.s32.totalorder %s38, 3
      %p432 = por %p430, %p431
      %p433 = scmp.ne.s32.totalorder %s422, %s423
      %p434 = scmp.eq.s32.totalorder %s38, 0
      %p435 = por %p433, %p434
      %p436 = scmp.ne.s32.totalorder %s422, %s423
      %p437 = scmp.eq.s32.totalorder %s39, 3
      %p438 = por %p436, %p437
      %p440 = scmp.ne.s32.totalorder %s423, %s439
      %p441 = scmp.eq.s32.totalorder %s39, 0
      %p442 = por %p440, %p441
      %s443 = ssub.s32 %s41, %s48
      %p444 = scmp.eq.s32.totalorder %s443, 0
      %s446 = sadd.s32 %s445, 1
      %s447 = scalar_select %p444, %s445, %s446
      %p450 = pneg %p444
      %p451 = scmp.eq.s32.totalorder %s33, 3
      %p452 = por %p450, %p451
      %p453 = scmp.ne.s32.totalorder %s445, %s448
      %p454 = scmp.eq.s32.totalorder %s33, 0
      %p455 = por %p453, %p454
      %p456 = scmp.ne.s32.totalorder %s445, %s448
      %p457 = scmp.eq.s32.totalorder %s38, 3
      %p458 = por %p456, %p457
      %p459 = scmp.ne.s32.totalorder %s448, %s449
      %p460 = scmp.eq.s32.totalorder %s38, 0
      %p461 = por %p459, %p460
      %p462 = scmp.ne.s32.totalorder %s448, %s449
      %p463 = scmp.eq.s32.totalorder %s39, 3
      %p464 = por %p462, %p463
      %p466 = scmp.ne.s32.totalorder %s449, %s465
      %p467 = scmp.eq.s32.totalorder %s39, 0
      %p468 = por %p466, %p467
      %s469 = ssub.s32 %s41, %s48
      %p470 = scmp.eq.s32.totalorder %s469, 0
      %s472 = sadd.s32 %s471, 1
      %s473 = scalar_select %p470, %s471, %s472
      %p476 = pneg %p470
      %p477 = scmp.eq.s32.totalorder %s33, 3
      %p478 = por %p476, %p477
      %p479 = scmp.ne.s32.totalorder %s471, %s474
      %p480 = scmp.eq.s32.totalorder %s33, 0
      %p481 = por %p479, %p480
      %p482 = scmp.ne.s32.totalorder %s471, %s474
      %p483 = scmp.eq.s32.totalorder %s38, 3
      %p484 = por %p482, %p483
      %p485 = scmp.ne.s32.totalorder %s474, %s475
      %p486 = scmp.eq.s32.totalorder %s38, 0
      %p487 = por %p485, %p486
      %p488 = scmp.ne.s32.totalorder %s474, %s475
      %p489 = scmp.eq.s32.totalorder %s39, 3
      %p490 = por %p488, %p489
      %p492 = scmp.ne.s32.totalorder %s475, %s491
      %p493 = scmp.eq.s32.totalorder %s39, 0
      %p494 = por %p492, %p493
      %s495 = ssub.s32 %s41, %s48
      %p496 = scmp.eq.s32.totalorder %s495, 0
      %s498 = sadd.s32 %s497, 1
      %s499 = scalar_select %p496, %s497, %s498
      %p502 = pneg %p496
      %p503 = scmp.eq.s32.totalorder %s33, 3
      %p504 = por %p502, %p503
      %p505 = scmp.ne.s32.totalorder %s497, %s500
      %p506 = scmp.eq.s32.totalorder %s33, 0
      %p507 = por %p505, %p506
      %p508 = scmp.ne.s32.totalorder %s497, %s500
      %p509 = scmp.eq.s32.totalorder %s38, 3
      %p510 = por %p508, %p509
      %p511 = scmp.ne.s32.totalorder %s500, %s501
      %p512 = scmp.eq.s32.totalorder %s38, 0
      %p513 = por %p511, %p512
      %p514 = scmp.ne.s32.totalorder %s500, %s501
      %p515 = scmp.eq.s32.totalorder %s39, 3
      %p516 = por %p514, %p515
      %p518 = scmp.ne.s32.totalorder %s501, %s517
      %p519 = scmp.eq.s32.totalorder %s39, 0
      %p520 = por %p518, %p519
      %s521 = ssub.s32 %s40, %s52
      %p522 = scmp.eq.s32.totalorder %s521, 0
      %s524 = sadd.s32 %s523, 1
      %s525 = scalar_select %p522, %s523, %s524
      %p528 = pneg %p522
      %p529 = scmp.eq.s32.totalorder %s33, 3
      %p530 = por %p528, %p529
      %p531 = scmp.ne.s32.totalorder %s523, %s526
      %p532 = scmp.eq.s32.totalorder %s33, 0
      %p533 = por %p531, %p532
      %p534 = scmp.ne.s32.totalorder %s523, %s526
      %p535 = scmp.eq.s32.totalorder %s38, 3
      %p536 = por %p534, %p535
      %p537 = scmp.ne.s32.totalorder %s526, %s527
      %p538 = scmp.eq.s32.totalorder %s38, 0
      %p539 = por %p537, %p538
      %p540 = scmp.ne.s32.totalorder %s526, %s527
      %p541 = scmp.eq.s32.totalorder %s39, 3
      %p542 = por %p540, %p541
      %p544 = scmp.ne.s32.totalorder %s527, %s543
      %p545 = scmp.eq.s32.totalorder %s39, 0
      %p546 = por %p544, %p545
      %p547 = scmp.le.s32.totalorder 1, %s33
      %p548 = scmp.lt.s32.totalorder %s33, 5
      %p549 = pnand %p547, %p548
      %p550 = pneg %p549
      // Predicated region
      $region9: #{tpu_custom_call.1} parent=5 // pred_check
        _
      $region10: #{tpu_custom_call.1} parent=5 // pred_check_branch
        %552 = sbr.rel (%p549) target = $region12
      $region11: #{tpu_custom_call.1} parent=5 // pred_region
        %s553 = ssub.s32 %s33, 1
      $region12: #{tpu_custom_call.1} parent=5 // pred_fallthru
        _
      %p554 = scmp.lt.s32.totalorder %s33, 4
      // Predicated region
      $region13: #{tpu_custom_call.1} parent=5 // pred_check
        %p555 = pneg %p554
      $region14: #{tpu_custom_call.1} parent=5 // pred_check_branch
        %557 = sbr.rel (%p555) target = $region16
      $region15: #{tpu_custom_call.1} parent=5 // pred_region
        // Predicated region
        $region17: #{tpu_custom_call.1} parent=15 // pred_check
          %p558 = pneg %p65
        $region18: #{tpu_custom_call.1} parent=15 // pred_check_branch
          %560 = sbr.rel (%p558) target = $region20
        $region19: #{tpu_custom_call.1} parent=15 // pred_region
          %s561 = sand.u32 %s55, 1
          %s562 = scalar_lea.sflag [#allocation3], %s561
          %s563 = sand.u32 %s55, 1
          %s564 = smul.addr %s563, 8
          %s565 = scalar_lea.vmem [#allocation2], %s564
          %s567 = ssub.s32 128, 128
          %568 = vsyncadd %s562, %s567
          %s569 = smul.addr %s40, 128
          %s570 = scalar_lea.hbm %s0, %s569
          %s572 = sshll.u32 %s565, 4
          %s573 = int_to_ptr.vmem [resolvable:$true] %s572
          %575 = dma.hbm_to_vmem [thread:$0]  %s570, 128, %s573, %s562
        $region20: #{tpu_custom_call.1} parent=15 // pred_fallthru
          _
        // Predicated region
        $region21: #{tpu_custom_call.1} parent=15 // pred_check
          %p576 = pneg %p91
        $region22: #{tpu_custom_call.1} parent=15 // pred_check_branch
          %578 = sbr.rel (%p576) target = $region24
        $region23: #{tpu_custom_call.1} parent=15 // pred_region
          %s579 = sand.u32 %s81, 1
          %s580 = scalar_lea.sflag [#allocation6], %s579
          %s581 = sand.u32 %s81, 1
          %s582 = scalar_lea.vmem [#allocation5], %s581
          %s584 = ssub.s32 16, 16
          %585 = vsyncadd %s580, %s584
          %s586 = smul.addr %s40, 16
          %s587 = scalar_lea.hbm %s1, %s586
          %s589 = sshll.u32 %s582, 4
          %s590 = int_to_ptr.vmem [resolvable:$true] %s589
          %592 = dma.hbm_to_vmem [thread:$0]  %s587, 16, %s590, %s580
        $region24: #{tpu_custom_call.1} parent=15 // pred_fallthru
          _
        // Predicated region
        $region25: #{tpu_custom_call.1} parent=15 // pred_check
          %p593 = pneg %p117
        $region26: #{tpu_custom_call.1} parent=15 // pred_check_branch
          %595 = sbr.rel (%p593) target = $region28
        $region27: #{tpu_custom_call.1} parent=15 // pred_region
          %p596 = scmp.lt.s32.totalorder %s41, 1
          %s597 = scalar_select %p596, %s41, 1
          %s598 = smul.addr %s597, 4
          %s599 = smul.addr %s598, 4
          %s600 = scalar_lea.vmem %s2, %s599
        $region28: #{tpu_custom_call.1} parent=15 // pred_fallthru
          _
        // Predicated region
        $region29: #{tpu_custom_call.1} parent=15 // pred_check
          %p601 = pneg %p143
        $region30: #{tpu_custom_call.1} parent=15 // pred_check_branch
          %603 = sbr.rel (%p601) target = $region32
        $region31: #{tpu_custom_call.1} parent=15 // pred_region
          %p604 = scmp.lt.s32.totalorder %s41, 1
          %s605 = scalar_select %p604, %s41, 1
          %s606 = scalar_lea.vmem %s3, %s605
        $region32: #{tpu_custom_call.1} parent=15 // pred_fallthru
          _
        // Predicated region
        $region33: #{tpu_custom_call.1} parent=15 // pred_check
          %p607 = pneg %p169
        $region34: #{tpu_custom_call.1} parent=15 // pred_check_branch
          %609 = sbr.rel (%p607) target = $region36
        $region35: #{tpu_custom_call.1} parent=15 // pred_region
          %p610 = scmp.lt.s32.totalorder %s41, 1
          %s611 = scalar_select %p610, %s41, 1
          %s612 = smul.addr %s611, 4
          %s613 = smul.addr %s612, 4
          %s614 = scalar_lea.vmem %s4, %s613
        $region36: #{tpu_custom_call.1} parent=15 // pred_fallthru
          _
        // Predicated region
        $region37: #{tpu_custom_call.1} parent=15 // pred_check
          %p615 = pneg %p195
        $region38: #{tpu_custom_call.1} parent=15 // pred_check_branch
          %617 = sbr.rel (%p615) target = $region40
        $region39: #{tpu_custom_call.1} parent=15 // pred_region
          %p618 = scmp.lt.s32.totalorder %s41, 1
          %s619 = scalar_select %p618, %s41, 1
          %s620 = scalar_lea.vmem %s5, %s619
        $region40: #{tpu_custom_call.1} parent=15 // pred_fallthru
          _
        // Predicated region
        $region41: #{tpu_custom_call.1} parent=15 // pred_check
          %p621 = pneg %p221
        $region42: #{tpu_custom_call.1} parent=15 // pred_check_branch
          %623 = sbr.rel (%p621) target = $region44
        $region43: #{tpu_custom_call.1} parent=15 // pred_region
          %p624 = scmp.lt.s32.totalorder %s41, 1
          %s625 = scalar_select %p624, %s41, 1
          %s626 = smul.addr %s625, 4
          %s627 = smul.addr %s626, 4
          %s628 = scalar_lea.vmem %s6, %s627
        $region44: #{tpu_custom_call.1} parent=15 // pred_fallthru
          _
        // Predicated region
        $region45: #{tpu_custom_call.1} parent=15 // pred_check
          %p629 = pneg %p247
        $region46: #{tpu_custom_call.1} parent=15 // pred_check_branch
          %631 = sbr.rel (%p629) target = $region48
        $region47: #{tpu_custom_call.1} parent=15 // pred_region
          %p632 = scmp.lt.s32.totalorder %s41, 1
          %s633 = scalar_select %p632, %s41, 1
          %s634 = scalar_lea.vmem %s7, %s633
        $region48: #{tpu_custom_call.1} parent=15 // pred_fallthru
          _
        // Predicated region
        $region49: #{tpu_custom_call.1} parent=15 // pred_check
          %p635 = pneg %p273
        $region50: #{tpu_custom_call.1} parent=15 // pred_check_branch
          %637 = sbr.rel (%p635) target = $region52
        $region51: #{tpu_custom_call.1} parent=15 // pred_region
          %p638 = scmp.lt.s32.totalorder %s41, 1
          %s639 = scalar_select %p638, %s41, 1
          %s640 = smul.addr %s639, 4
          %s641 = smul.addr %s640, 4
          %s642 = scalar_lea.vmem %s8, %s641
        $region52: #{tpu_custom_call.1} parent=15 // pred_fallthru
          _
        // Predicated region
        $region53: #{tpu_custom_call.1} parent=15 // pred_check
          %p643 = pneg %p299
        $region54: #{tpu_custom_call.1} parent=15 // pred_check_branch
          %645 = sbr.rel (%p643) target = $region56
        $region55: #{tpu_custom_call.1} parent=15 // pred_region
          %p646 = scmp.lt.s32.totalorder %s41, 1
          %s647 = scalar_select %p646, %s41, 1
          %s648 = scalar_lea.vmem %s9, %s647
        $region56: #{tpu_custom_call.1} parent=15 // pred_fallthru
          _
        // Predicated region
        $region57: #{tpu_custom_call.1} parent=15 // pred_check
          %p649 = pneg %p325
        $region58: #{tpu_custom_call.1} parent=15 // pred_check_branch
          %651 = sbr.rel (%p649) target = $region60
        $region59: #{tpu_custom_call.1} parent=15 // pred_region
          %p652 = scmp.lt.s32.totalorder %s41, 1
          %s653 = scalar_select %p652, %s41, 1
          %s654 = smul.addr %s653, 4
          %s655 = smul.addr %s654, 4
          %s656 = scalar_lea.vmem %s10, %s655
        $region60: #{tpu_custom_call.1} parent=15 // pred_fallthru
          _
        // Predicated region
        $region61: #{tpu_custom_call.1} parent=15 // pred_check
          %p657 = pneg %p351
        $region62: #{tpu_custom_call.1} parent=15 // pred_check_branch
          %659 = sbr.rel (%p657) target = $region64
        $region63: #{tpu_custom_call.1} parent=15 // pred_region
          %p660 = scmp.lt.s32.totalorder %s41, 1
          %s661 = scalar_select %p660, %s41, 1
          %s662 = scalar_lea.vmem %s11, %s661
        $region64: #{tpu_custom_call.1} parent=15 // pred_fallthru
          _
        // Predicated region
        $region65: #{tpu_custom_call.1} parent=15 // pred_check
          %p663 = pneg %p377
        $region66: #{tpu_custom_call.1} parent=15 // pred_check_branch
          %665 = sbr.rel (%p663) target = $region68
        $region67: #{tpu_custom_call.1} parent=15 // pred_region
          %p666 = scmp.lt.s32.totalorder %s41, 1
          %s667 = scalar_select %p666, %s41, 1
          %s668 = smul.addr %s667, 16
          %s669 = smul.addr %s668, 4
          %s670 = scalar_lea.vmem %s12, %s669
        $region68: #{tpu_custom_call.1} parent=15 // pred_fallthru
          _
        // Predicated region
        $region69: #{tpu_custom_call.1} parent=15 // pred_check
          %p671 = pneg %p403
        $region70: #{tpu_custom_call.1} parent=15 // pred_check_branch
          %673 = sbr.rel (%p671) target = $region72
        $region71: #{tpu_custom_call.1} parent=15 // pred_region
          %p674 = scmp.lt.s32.totalorder %s41, 1
          %s675 = scalar_select %p674, %s41, 1
          %s676 = scalar_lea.vmem %s13, %s675
        $region72: #{tpu_custom_call.1} parent=15 // pred_fallthru
          _
        // Predicated region
        $region73: #{tpu_custom_call.1} parent=15 // pred_check
          %p677 = pneg %p429
        $region74: #{tpu_custom_call.1} parent=15 // pred_check_branch
          %679 = sbr.rel (%p677) target = $region76
        $region75: #{tpu_custom_call.1} parent=15 // pred_region
          %p680 = scmp.lt.s32.totalorder %s41, 1
          %s681 = scalar_select %p680, %s41, 1
          %s682 = scalar_lea.vmem %s14, %s681
        $region76: #{tpu_custom_call.1} parent=15 // pred_fallthru
          _
        // Predicated region
        $region77: #{tpu_custom_call.1} parent=15 // pred_check
          %p683 = pneg %p455
        $region78: #{tpu_custom_call.1} parent=15 // pred_check_branch
          %685 = sbr.rel (%p683) target = $region80
        $region79: #{tpu_custom_call.1} parent=15 // pred_region
          %p686 = scmp.lt.s32.totalorder %s41, 1
          %s687 = scalar_select %p686, %s41, 1
          %s688 = scalar_lea.vmem %s15, %s687
        $region80: #{tpu_custom_call.1} parent=15 // pred_fallthru
          _
        // Predicated region
        $region81: #{tpu_custom_call.1} parent=15 // pred_check
          %p689 = pneg %p481
        $region82: #{tpu_custom_call.1} parent=15 // pred_check_branch
          %691 = sbr.rel (%p689) target = $region84
        $region83: #{tpu_custom_call.1} parent=15 // pred_region
          %p692 = scmp.lt.s32.totalorder %s41, 1
          %s693 = scalar_select %p692, %s41, 1
          %s694 = scalar_lea.vmem %s16, %s693
        $region84: #{tpu_custom_call.1} parent=15 // pred_fallthru
          _
        // Predicated region
        $region85: #{tpu_custom_call.1} parent=15 // pred_check
          %p695 = pneg %p507
        $region86: #{tpu_custom_call.1} parent=15 // pred_check_branch
          %697 = sbr.rel (%p695) target = $region88
        $region87: #{tpu_custom_call.1} parent=15 // pred_region
          %p698 = scmp.lt.s32.totalorder %s41, 1
          %s699 = scalar_select %p698, %s41, 1
          %s700 = scalar_lea.vmem %s17, %s699
        $region88: #{tpu_custom_call.1} parent=15 // pred_fallthru
          _
      $region16: #{tpu_custom_call.1} parent=5 // pred_fallthru
        _
      %p701 = scmp.le.s32.totalorder 1, %s33
      %p702 = scmp.lt.s32.totalorder %s33, 5
      %p703 = pnand %p701, %p702
      %p704 = pneg %p703
      // Predicated region
      $region89: #{tpu_custom_call.1} parent=5 // pred_check
        _
      $region90: #{tpu_custom_call.1} parent=5 // pred_check_branch
        %706 = sbr.rel (%p703) target = $region92
      $region91: #{tpu_custom_call.1} parent=5 // pred_region
        %s707 = ssub.s32 %s33, 1
        %s708 = sand.u32 %s58, 1
        %s709 = scalar_lea.sflag [#allocation3], %s708
        %s710 = sand.u32 %s58, 1
        %s711 = smul.addr %s710, 8
        %s712 = scalar_lea.vmem [#allocation2], %s711
        // Predicated region
        $region93: #{tpu_custom_call.1} parent=91 // pred_check
          %p713 = pneg %p71
        $region94: #{tpu_custom_call.1} parent=91 // pred_check_branch
          %715 = sbr.rel (%p713) target = $region96
        $region95: #{tpu_custom_call.1} parent=91 // pred_region
          %716 = dma.done %s709, 128
        $region96: #{tpu_custom_call.1} parent=91 // pred_fallthru
          _
        %s717 = sand.u32 %s84, 1
        %s718 = scalar_lea.sflag [#allocation6], %s717
        %s719 = sand.u32 %s84, 1
        %s720 = scalar_lea.vmem [#allocation5], %s719
        // Predicated region
        $region97: #{tpu_custom_call.1} parent=91 // pred_check
          %p721 = pneg %p97
        $region98: #{tpu_custom_call.1} parent=91 // pred_check_branch
          %723 = sbr.rel (%p721) target = $region100
        $region99: #{tpu_custom_call.1} parent=91 // pred_region
          %724 = dma.done %s718, 16
        $region100: #{tpu_custom_call.1} parent=91 // pred_fallthru
          _
        %s725 = sand.u32 %s58, 1
        %s726 = scalar_lea.sflag [#allocation3], %s725
        %s727 = sand.u32 %s58, 1
        %s728 = smul.addr %s727, 8
        %s729 = scalar_lea.vmem [#allocation2], %s728
        %p730 = pneg %p71
        %p731 = pneg %p68
        %s732 = sand.u32 %s84, 1
        %s733 = scalar_lea.sflag [#allocation6], %s732
        %s734 = sand.u32 %s84, 1
        %s735 = scalar_lea.vmem [#allocation5], %s734
        %p736 = pneg %p97
        %p737 = pneg %p94
        %p738 = scmp.lt.s32.totalorder %s43, 1
        %s739 = scalar_select %p738, %s43, 1
        %s740 = smul.addr %s739, 4
        %s741 = smul.addr %s740, 4
        %s742 = scalar_lea.vmem %s2, %s741
        %p743 = pneg %p123
        %p744 = pneg %p120
        %p745 = scmp.lt.s32.totalorder %s43, 1
        %s746 = scalar_select %p745, %s43, 1
        %s747 = scalar_lea.vmem %s3, %s746
        %p748 = pneg %p149
        %p749 = pneg %p146
        %p750 = scmp.lt.s32.totalorder %s43, 1
        %s751 = scalar_select %p750, %s43, 1
        %s752 = smul.addr %s751, 4
        %s753 = smul.addr %s752, 4
        %s754 = scalar_lea.vmem %s4, %s753
        %p755 = pneg %p175
        %p756 = pneg %p172
        %p757 = scmp.lt.s32.totalorder %s43, 1
        %s758 = scalar_select %p757, %s43, 1
        %s759 = scalar_lea.vmem %s5, %s758
        %p760 = pneg %p201
        %p761 = pneg %p198
        %p762 = scmp.lt.s32.totalorder %s43, 1
        %s763 = scalar_select %p762, %s43, 1
        %s764 = smul.addr %s763, 4
        %s765 = smul.addr %s764, 4
        %s766 = scalar_lea.vmem %s6, %s765
        %p767 = pneg %p227
        %p768 = pneg %p224
        %p769 = scmp.lt.s32.totalorder %s43, 1
        %s770 = scalar_select %p769, %s43, 1
        %s771 = scalar_lea.vmem %s7, %s770
        %p772 = pneg %p253
        %p773 = pneg %p250
        %p774 = scmp.lt.s32.totalorder %s43, 1
        %s775 = scalar_select %p774, %s43, 1
        %s776 = smul.addr %s775, 4
        %s777 = smul.addr %s776, 4
        %s778 = scalar_lea.vmem %s8, %s777
        %p779 = pneg %p279
        %p780 = pneg %p276
        %p781 = scmp.lt.s32.totalorder %s43, 1
        %s782 = scalar_select %p781, %s43, 1
        %s783 = scalar_lea.vmem %s9, %s782
        %p784 = pneg %p305
        %p785 = pneg %p302
        %p786 = scmp.lt.s32.totalorder %s43, 1
        %s787 = scalar_select %p786, %s43, 1
        %s788 = smul.addr %s787, 4
        %s789 = smul.addr %s788, 4
        %s790 = scalar_lea.vmem %s10, %s789
        %p791 = pneg %p331
        %p792 = pneg %p328
        %p793 = scmp.lt.s32.totalorder %s43, 1
        %s794 = scalar_select %p793, %s43, 1
        %s795 = scalar_lea.vmem %s11, %s794
        %p796 = pneg %p357
        %p797 = pneg %p354
        %p798 = scmp.lt.s32.totalorder %s43, 1
        %s799 = scalar_select %p798, %s43, 1
        %s800 = smul.addr %s799, 16
        %s801 = smul.addr %s800, 4
        %s802 = scalar_lea.vmem %s12, %s801
        %p803 = pneg %p383
        %p804 = pneg %p380
        %p805 = scmp.lt.s32.totalorder %s43, 1
        %s806 = scalar_select %p805, %s43, 1
        %s807 = scalar_lea.vmem %s13, %s806
        %p808 = pneg %p409
        %p809 = pneg %p406
        %p810 = scmp.lt.s32.totalorder %s43, 1
        %s811 = scalar_select %p810, %s43, 1
        %s812 = scalar_lea.vmem %s14, %s811
        %p813 = pneg %p435
        %p814 = pneg %p432
        %p815 = scmp.lt.s32.totalorder %s43, 1
        %s816 = scalar_select %p815, %s43, 1
        %s817 = scalar_lea.vmem %s15, %s816
        %p818 = pneg %p461
        %p819 = pneg %p458
        %p820 = scmp.lt.s32.totalorder %s43, 1
        %s821 = scalar_select %p820, %s43, 1
        %s822 = scalar_lea.vmem %s16, %s821
        %p823 = pneg %p487
        %p824 = pneg %p484
        %p825 = scmp.lt.s32.totalorder %s43, 1
        %s826 = scalar_select %p825, %s43, 1
        %s827 = scalar_lea.vmem %s17, %s826
        %p828 = pneg %p513
        %p829 = pneg %p510
        %p830 = pneg %p539
        %p831 = pneg %p536
        %s832 = sand.u32 %s526, 1
        %s833 = scalar_lea.sflag [#allocation4], %s832
        %s834 = sand.u32 %s526, 1
        %s835 = smul.addr %s834, 8
        %s836 = scalar_lea.vmem [#allocation7], %s835
        %p837 = scmp.lt.s32.totalorder %s43, 1
        %s838 = scalar_select %p837, %s43, 1
        %s839 = smul.addr %s838, 4
        %s840 = smul.addr %s839, 4
        %s841 = scalar_lea.vmem %s2, %s840
        %p842 = scmp.lt.s32.totalorder %s43, 1
        %s843 = scalar_select %p842, %s43, 1
        %s844 = scalar_lea.vmem %s3, %s843
        %p845 = scmp.lt.s32.totalorder %s43, 1
        %s846 = scalar_select %p845, %s43, 1
        %s847 = smul.addr %s846, 4
        %s848 = smul.addr %s847, 4
        %s849 = scalar_lea.vmem %s4, %s848
        %p850 = scmp.lt.s32.totalorder %s43, 1
        %s851 = scalar_select %p850, %s43, 1
        %s852 = scalar_lea.vmem %s5, %s851
        %p853 = scmp.lt.s32.totalorder %s43, 1
        %s854 = scalar_select %p853, %s43, 1
        %s855 = smul.addr %s854, 4
        %s856 = smul.addr %s855, 4
        %s857 = scalar_lea.vmem %s6, %s856
        %p858 = scmp.lt.s32.totalorder %s43, 1
        %s859 = scalar_select %p858, %s43, 1
        %s860 = scalar_lea.vmem %s7, %s859
        %p861 = scmp.lt.s32.totalorder %s43, 1
        %s862 = scalar_select %p861, %s43, 1
        %s863 = smul.addr %s862, 4
        %s864 = smul.addr %s863, 4
        %s865 = scalar_lea.vmem %s8, %s864
        %p866 = scmp.lt.s32.totalorder %s43, 1
        %s867 = scalar_select %p866, %s43, 1
        %s868 = scalar_lea.vmem %s9, %s867
        %p869 = scmp.lt.s32.totalorder %s43, 1
        %s870 = scalar_select %p869, %s43, 1
        %s871 = smul.addr %s870, 4
        %s872 = smul.addr %s871, 4
        %s873 = scalar_lea.vmem %s10, %s872
        %p874 = scmp.lt.s32.totalorder %s43, 1
        %s875 = scalar_select %p874, %s43, 1
        %s876 = scalar_lea.vmem %s11, %s875
        %p877 = scmp.lt.s32.totalorder %s43, 1
        %s878 = scalar_select %p877, %s43, 1
        %s879 = smul.addr %s878, 16
        %s880 = smul.addr %s879, 4
        %s881 = scalar_lea.vmem %s12, %s880
        %p882 = scmp.lt.s32.totalorder %s43, 1
        %s883 = scalar_select %p882, %s43, 1
        %s884 = scalar_lea.vmem %s13, %s883
        %p885 = scmp.lt.s32.totalorder %s43, 1
        %s886 = scalar_select %p885, %s43, 1
        %s887 = scalar_lea.vmem %s14, %s886
        %p888 = scmp.lt.s32.totalorder %s43, 1
        %s889 = scalar_select %p888, %s43, 1
        %s890 = scalar_lea.vmem %s15, %s889
        %p891 = scmp.lt.s32.totalorder %s43, 1
        %s892 = scalar_select %p891, %s43, 1
        %s893 = scalar_lea.vmem %s16, %s892
        %p894 = scmp.lt.s32.totalorder %s43, 1
        %s895 = scalar_select %p894, %s43, 1
        %s896 = scalar_lea.vmem %s17, %s895
        %p898 = scmp.eq.s32.totalorder %s43, 0
        // Predicated region
        $region101: #{tpu_custom_call.1} parent=91 // pred_check
          %p899 = pneg %p898
        $region102: #{tpu_custom_call.1} parent=91 // pred_check_branch
          %901 = sbr.rel (%p899) target = $region104
        $region103: #{tpu_custom_call.1} parent=91 // pred_region
          %v902 = vld [vmem:[%s712] sm:$0xff]
          %vm903 = vcmask 261120
          %904 = vst.msk [vmem:[%s836] sm:$0xff] %vm903, %v902
        $region104: #{tpu_custom_call.1} parent=91 // pred_fallthru
          _
        %v905 = vld [vmem:[%s836] sm:$0xff]
        %v906 = vld [vmem:[%s720] sm:$0x1]
        %vm907 = vcmp.gt.f32.partialorder %v906, 0.0
        %v908 = vld [vmem:[%s887] sm:$0x1]
        %v909 = vld [vmem:[%s890] sm:$0x1]
        %vm910 = vcmask 261120
        %v911 = vsel %vm910, %v905, 0.0
        %912 = vadd.xlane.f32.xlu0 %v911
        %v913 = vpop.xlane.xlu0 %912
        %v914 = vrcp.pop 32.0
        %v915 = vmul.f32 %v913, %v914
        %v916 = vsub.f32 %v905, %v915
        %v917 = vmul.f32 %v916, %v916
        %v918 = vsel %vm910, %v917, 0.0
        %919 = vadd.xlane.f32.xlu0 %v918
        %v920 = vpop.xlane.xlu0 %919
        %v921 = vrcp.pop 31.0
        %v922 = vmul.f32 %v920, %v921
        %v923 = vrsqrt.pop %v922
        %v924 = vmul.f32 %v922, %v923
        %vm925 = vcmp.eq.f32.partialorder %v922, inf
        %v926 = vsel %vm925, %v922, %v924
        %vm927 = vcmp.eq.f32.partialorder %v922, 0.0
        %v928 = vand.u32 %v922, 2147483648
        %v929 = vsel %vm927, %v928, %v926
        %v930 = vadd.f32 %v929, 1e-06
        %v931 = vrcp.pop %v930
        %v933 = vlaneseq
        %v934 = vshrl.u32 %v933, 7
        %v935 = vsub.s32 0, %v934
        %v936 = vrot.slane %v908, %v935
        %v938 = vmul.f32 %v936, %v916
        %v939 = vmul.f32 %v938, %v931
        %v941 = vlaneseq
        %v942 = vshrl.u32 %v941, 7
        %v943 = vsub.s32 0, %v942
        %v944 = vrot.slane %v909, %v943
        %v946 = vadd.f32 %v939, %v944
        %v947 = vpack.c.bf16 %v946, %v946
        %v948 = vld [vmem:[%s841] sm:$0xf]
        %v949 = vld [vmem:[%s841 + $0x4] sm:$0xf]
        %v950 = vld [vmem:[%s841 + $0x8] sm:$0xf]
        %v951 = vld [vmem:[%s841 + $0xc] sm:$0xf]
        %v952 = vld [vmem:[%s844] sm:$0x1]
        %v954 = vlaneseq
        %v955 = vshrl.u32 %v954, 7
        %v956 = vsub.s32 0, %v955
        %v957 = vrot.slane %v952, %v956
        %v963 = vunpack.c.l.b16 %v948
        %v964 = vunpack.c.l.b16 %v949
        %v965 = vunpack.c.l.b16 %v950
        %v966 = vunpack.c.l.b16 %v951
        %v967 = vpack.c.b16 %v964, %v963
        %v968 = vpack.c.b16 %v966, %v965
        %v972 = vsel %vm910, %v947, 0
        %974 = vmatprep.subr.bf16.mxu0 0
        %975 = vmatpush1.bf16.msra.mxu0 0
        %976 = vmatprep.subr.bf16.mxu0 0
        %977 = vmatpush1.bf16.msra.mxu0 0
        %978 = vmatprep.subr.bf16.mxu0 0
        %979 = vmatpush1.bf16.msra.mxu0 0
        %980 = vmatprep.subr.bf16.mxu0 0
        %981 = vmatpush1.bf16.msra.mxu0 0
        %982 = vmatprep.subr.bf16.mxu0 0
        %983 = vmatpush1.bf16.msra.mxu0 0
        %984 = vmatprep.subr.bf16.mxu0 0
        %985 = vmatpush1.bf16.msra.mxu0 0
        %986 = vmatprep.subr.bf16.mxu0 0
        %987 = vmatpush1.bf16.msra.mxu0 %v968
        %988 = vmatprep.subr.bf16.mxu0 0
        %989 = vmatpush1.bf16.msra.mxu0 %v967
        %990 = vmatprep.subr.bf16.mxu0 0
        %991 = vmatpush2.bf16.msra.mxu0 0
        %992 = vmatprep.subr.bf16.mxu0 0
        %993 = vmatpush2.bf16.msra.mxu0 0
        %994 = vmatprep.subr.bf16.mxu0 0
        %995 = vmatpush2.bf16.msra.mxu0 0
        %996 = vmatprep.subr.bf16.mxu0 0
        %997 = vmatpush2.bf16.msra.mxu0 0
        %998 = vmatprep.subr.bf16.mxu0 0
        %999 = vmatpush2.bf16.msra.mxu0 0
        %1000 = vmatprep.subr.bf16.mxu0 0
        %1001 = vmatpush2.bf16.msra.mxu0 0
        %1002 = vmatprep.subr.bf16.mxu0 0
        %1003 = vmatpush2.bf16.msra.mxu0 0
        %1004 = vmatprep.subr.bf16.mxu0 0
        %1005 = vmatpush2.bf16.msra.mxu0 0
        %1006 = vmatprep.mubr.bf16.mxu0 0
        %1007 = vmatmul.mubr.bf16.gmra.mxu0 %v972
        %v1008 = vpop.f32.mrf.mxu0
        %v1009 = vadd.f32 %v957, %v1008
        %v1010 = vpop.f32.mrf.mxu0
        %v1011 = vpop.f32.mrf.mxu0
        %v1012 = vpop.f32.mrf.mxu0
        %1013 = vdwg.mxu0
        %v1014 = vld [vmem:[%s849] sm:$0xf]
        %v1015 = vld [vmem:[%s849 + $0x4] sm:$0xf]
        %v1016 = vld [vmem:[%s849 + $0x8] sm:$0xf]
        %v1017 = vld [vmem:[%s849 + $0xc] sm:$0xf]
        %v1018 = vld [vmem:[%s852] sm:$0x1]
        %v1020 = vlaneseq
        %v1021 = vshrl.u32 %v1020, 7
        %v1022 = vsub.s32 0, %v1021
        %v1023 = vrot.slane %v1018, %v1022
        %v1029 = vunpack.c.l.b16 %v1014
        %v1030 = vunpack.c.l.b16 %v1015
        %v1031 = vunpack.c.l.b16 %v1016
        %v1032 = vunpack.c.l.b16 %v1017
        %v1033 = vpack.c.b16 %v1030, %v1029
        %v1034 = vpack.c.b16 %v1032, %v1031
        %1037 = vmatprep.subr.bf16.mxu0 0
        %1038 = vmatpush1.bf16.msra.mxu0 0
        %1039 = vmatprep.subr.bf16.mxu0 0
        %1040 = vmatpush1.bf16.msra.mxu0 0
        %1041 = vmatprep.subr.bf16.mxu0 0
        %1042 = vmatpush1.bf16.msra.mxu0 0
        %1043 = vmatprep.subr.bf16.mxu0 0
        %1044 = vmatpush1.bf16.msra.mxu0 0
        %1045 = vmatprep.subr.bf16.mxu0 0
        %1046 = vmatpush1.bf16.msra.mxu0 0
        %1047 = vmatprep.subr.bf16.mxu0 0
        %1048 = vmatpush1.bf16.msra.mxu0 0
        %1049 = vmatprep.subr.bf16.mxu0 0
        %1050 = vmatpush1.bf16.msra.mxu0 %v1034
        %1051 = vmatprep.subr.bf16.mxu0 0
        %1052 = vmatpush1.bf16.msra.mxu0 %v1033
        %1053 = vmatprep.subr.bf16.mxu0 0
        %1054 = vmatpush2.bf16.msra.mxu0 0
        %1055 = vmatprep.subr.bf16.mxu0 0
        %1056 = vmatpush2.bf16.msra.mxu0 0
        %1057 = vmatprep.subr.bf16.mxu0 0
        %1058 = vmatpush2.bf16.msra.mxu0 0
        %1059 = vmatprep.subr.bf16.mxu0 0
        %1060 = vmatpush2.bf16.msra.mxu0 0
        %1061 = vmatprep.subr.bf16.mxu0 0
        %1062 = vmatpush2.bf16.msra.mxu0 0
        %1063 = vmatprep.subr.bf16.mxu0 0
        %1064 = vmatpush2.bf16.msra.mxu0 0
        %1065 = vmatprep.subr.bf16.mxu0 0
        %1066 = vmatpush2.bf16.msra.mxu0 0
        %1067 = vmatprep.subr.bf16.mxu0 0
        %1068 = vmatpush2.bf16.msra.mxu0 0
        %1069 = vmatprep.mubr.bf16.mxu0 0
        %1070 = vmatmul.mubr.bf16.gmra.mxu0 %v972
        %v1071 = vpop.f32.mrf.mxu0
        %v1072 = vadd.f32 %v1023, %v1071
        %v1073 = vpop.f32.mrf.mxu0
        %v1074 = vpop.f32.mrf.mxu0
        %v1075 = vpop.f32.mrf.mxu0
        %1076 = vdwg.mxu0
        %v1077 = vld [vmem:[%s857] sm:$0xf]
        %v1078 = vld [vmem:[%s857 + $0x4] sm:$0xf]
        %v1079 = vld [vmem:[%s857 + $0x8] sm:$0xf]
        %v1080 = vld [vmem:[%s857 + $0xc] sm:$0xf]
        %v1081 = vld [vmem:[%s860] sm:$0x1]
        %v1083 = vlaneseq
        %v1084 = vshrl.u32 %v1083, 7
        %v1085 = vsub.s32 0, %v1084
        %v1086 = vrot.slane %v1081, %v1085
        %v1092 = vunpack.c.l.b16 %v1077
        %v1093 = vunpack.c.l.b16 %v1078
        %v1094 = vunpack.c.l.b16 %v1079
        %v1095 = vunpack.c.l.b16 %v1080
        %v1096 = vpack.c.b16 %v1093, %v1092
        %v1097 = vpack.c.b16 %v1095, %v1094
        %1100 = vmatprep.subr.bf16.mxu0 0
        %1101 = vmatpush1.bf16.msra.mxu0 0
        %1102 = vmatprep.subr.bf16.mxu0 0
        %1103 = vmatpush1.bf16.msra.mxu0 0
        %1104 = vmatprep.subr.bf16.mxu0 0
        %1105 = vmatpush1.bf16.msra.mxu0 0
        %1106 = vmatprep.subr.bf16.mxu0 0
        %1107 = vmatpush1.bf16.msra.mxu0 0
        %1108 = vmatprep.subr.bf16.mxu0 0
        %1109 = vmatpush1.bf16.msra.mxu0 0
        %1110 = vmatprep.subr.bf16.mxu0 0
        %1111 = vmatpush1.bf16.msra.mxu0 0
        %1112 = vmatprep.subr.bf16.mxu0 0
        %1113 = vmatpush1.bf16.msra.mxu0 %v1097
        %1114 = vmatprep.subr.bf16.mxu0 0
        %1115 = vmatpush1.bf16.msra.mxu0 %v1096
        %1116 = vmatprep.subr.bf16.mxu0 0
        %1117 = vmatpush2.bf16.msra.mxu0 0
        %1118 = vmatprep.subr.bf16.mxu0 0
        %1119 = vmatpush2.bf16.msra.mxu0 0
        %1120 = vmatprep.subr.bf16.mxu0 0
        %1121 = vmatpush2.bf16.msra.mxu0 0
        %1122 = vmatprep.subr.bf16.mxu0 0
        %1123 = vmatpush2.bf16.msra.mxu0 0
        %1124 = vmatprep.subr.bf16.mxu0 0
        %1125 = vmatpush2.bf16.msra.mxu0 0
        %1126 = vmatprep.subr.bf16.mxu0 0
        %1127 = vmatpush2.bf16.msra.mxu0 0
        %1128 = vmatprep.subr.bf16.mxu0 0
        %1129 = vmatpush2.bf16.msra.mxu0 0
        %1130 = vmatprep.subr.bf16.mxu0 0
        %1131 = vmatpush2.bf16.msra.mxu0 0
        %1132 = vmatprep.mubr.bf16.mxu0 0
        %1133 = vmatmul.mubr.bf16.gmra.mxu0 %v972
        %v1134 = vpop.f32.mrf.mxu0
        %v1135 = vadd.f32 %v1086, %v1134
        %v1136 = vpop.f32.mrf.mxu0
        %v1137 = vpop.f32.mrf.mxu0
        %v1138 = vpop.f32.mrf.mxu0
        %1139 = vdwg.mxu0
        %v1140 = vmul.f32 %v1009, 0.35355338
        %1141 = vxpose.xlu0.b32.start [1/16] %v1140, 128
        %1142 = vxpose.xlu0.b32.cont [2/16] 0.0, 128
        %1143 = vxpose.xlu0.b32.cont [3/16] 0.0, 128
        %1144 = vxpose.xlu0.b32.cont [4/16] 0.0, 128
        %1145 = vxpose.xlu0.b32.cont [5/16] 0.0, 128
        %1146 = vxpose.xlu0.b32.cont [6/16] 0.0, 128
        %1147 = vxpose.xlu0.b32.cont [7/16] 0.0, 128
        %1148 = vxpose.xlu0.b32.cont [8/16] 0.0, 128
        %1149 = vxpose.xlu0.b32.cont [9/16] 0.0, 128
        %1150 = vxpose.xlu0.b32.cont [10/16] 0.0, 128
        %1151 = vxpose.xlu0.b32.cont [11/16] 0.0, 128
        %1152 = vxpose.xlu0.b32.cont [12/16] 0.0, 128
        %1153 = vxpose.xlu0.b32.cont [13/16] 0.0, 128
        %1154 = vxpose.xlu0.b32.cont [14/16] 0.0, 128
        %1155 = vxpose.xlu0.b32.cont [15/16] 0.0, 128
        %1156 = vxpose.xlu0.b32.end [16/16] 0.0, 128
        %v1157 = vpop.trf.xlu0
        %v1158 = vpop.trf.xlu0
        %v1159 = vpop.trf.xlu0
        %v1160 = vpop.trf.xlu0
        %v1161 = vpop.trf.xlu0
        %v1162 = vpop.trf.xlu0
        %v1163 = vpop.trf.xlu0
        %v1164 = vpop.trf.xlu0
        %v1165 = vpop.trf.xlu0
        %v1166 = vpop.trf.xlu0
        %v1167 = vpop.trf.xlu0
        %v1168 = vpop.trf.xlu0
        %v1169 = vpop.trf.xlu0
        %v1170 = vpop.trf.xlu0
        %v1171 = vpop.trf.xlu0
        %v1172 = vpop.trf.xlu0
        %1173 = vxpose.xlu0.b32.start [1/16] %v1072, 128
        %1174 = vxpose.xlu0.b32.cont [2/16] 0.0, 128
        %1175 = vxpose.xlu0.b32.cont [3/16] 0.0, 128
        %1176 = vxpose.xlu0.b32.cont [4/16] 0.0, 128
        %1177 = vxpose.xlu0.b32.cont [5/16] 0.0, 128
        %1178 = vxpose.xlu0.b32.cont [6/16] 0.0, 128
        %1179 = vxpose.xlu0.b32.cont [7/16] 0.0, 128
        %1180 = vxpose.xlu0.b32.cont [8/16] 0.0, 128
        %1181 = vxpose.xlu0.b32.cont [9/16] 0.0, 128
        %1182 = vxpose.xlu0.b32.cont [10/16] 0.0, 128
        %1183 = vxpose.xlu0.b32.cont [11/16] 0.0, 128
        %1184 = vxpose.xlu0.b32.cont [12/16] 0.0, 128
        %1185 = vxpose.xlu0.b32.cont [13/16] 0.0, 128
        %1186 = vxpose.xlu0.b32.cont [14/16] 0.0, 128
        %1187 = vxpose.xlu0.b32.cont [15/16] 0.0, 128
        %1188 = vxpose.xlu0.b32.end [16/16] 0.0, 128
        %v1189 = vpop.trf.xlu0
        %v1190 = vpop.trf.xlu0
        %v1191 = vpop.trf.xlu0
        %v1192 = vpop.trf.xlu0
        %v1193 = vpop.trf.xlu0
        %v1194 = vpop.trf.xlu0
        %v1195 = vpop.trf.xlu0
        %v1196 = vpop.trf.xlu0
        %v1197 = vpop.trf.xlu0
        %v1198 = vpop.trf.xlu0
        %v1199 = vpop.trf.xlu0
        %v1200 = vpop.trf.xlu0
        %v1201 = vpop.trf.xlu0
        %v1202 = vpop.trf.xlu0
        %v1203 = vpop.trf.xlu0
        %v1204 = vpop.trf.xlu0
        %1205 = vxpose.xlu0.b32.start [1/16] %v1135, 128
        %1206 = vxpose.xlu0.b32.cont [2/16] 0.0, 128
        %1207 = vxpose.xlu0.b32.cont [3/16] 0.0, 128
        %1208 = vxpose.xlu0.b32.cont [4/16] 0.0, 128
        %1209 = vxpose.xlu0.b32.cont [5/16] 0.0, 128
        %1210 = vxpose.xlu0.b32.cont [6/16] 0.0, 128
        %1211 = vxpose.xlu0.b32.cont [7/16] 0.0, 128
        %1212 = vxpose.xlu0.b32.cont [8/16] 0.0, 128
        %1213 = vxpose.xlu0.b32.cont [9/16] 0.0, 128
        %1214 = vxpose.xlu0.b32.cont [10/16] 0.0, 128
        %1215 = vxpose.xlu0.b32.cont [11/16] 0.0, 128
        %1216 = vxpose.xlu0.b32.cont [12/16] 0.0, 128
        %1217 = vxpose.xlu0.b32.cont [13/16] 0.0, 128
        %1218 = vxpose.xlu0.b32.cont [14/16] 0.0, 128
        %1219 = vxpose.xlu0.b32.cont [15/16] 0.0, 128
        %1220 = vxpose.xlu0.b32.end [16/16] 0.0, 128
        %v1221 = vpop.trf.xlu0
        %v1222 = vpop.trf.xlu0
        %v1223 = vpop.trf.xlu0
        %v1224 = vpop.trf.xlu0
        %v1225 = vpop.trf.xlu0
        %v1226 = vpop.trf.xlu0
        %v1227 = vpop.trf.xlu0
        %v1228 = vpop.trf.xlu0
        %v1229 = vpop.trf.xlu0
        %v1230 = vpop.trf.xlu0
        %v1231 = vpop.trf.xlu0
        %v1232 = vpop.trf.xlu0
        %v1233 = vpop.trf.xlu0
        %v1234 = vpop.trf.xlu0
        %v1235 = vpop.trf.xlu0
        %v1236 = vpop.trf.xlu0
        %1237 = vxpose.xlu0.b32.start [1/16] %v1157, 128
        %1238 = vxpose.xlu0.b32.cont [2/16] 0.0, 128
        %1239 = vxpose.xlu0.b32.cont [3/16] 0.0, 128
        %1240 = vxpose.xlu0.b32.cont [4/16] 0.0, 128
        %1241 = vxpose.xlu0.b32.cont [5/16] 0.0, 128
        %1242 = vxpose.xlu0.b32.cont [6/16] 0.0, 128
        %1243 = vxpose.xlu0.b32.cont [7/16] 0.0, 128
        %1244 = vxpose.xlu0.b32.cont [8/16] 0.0, 128
        %1245 = vxpose.xlu0.b32.cont [9/16] 0.0, 128
        %1246 = vxpose.xlu0.b32.cont [10/16] 0.0, 128
        %1247 = vxpose.xlu0.b32.cont [11/16] 0.0, 128
        %1248 = vxpose.xlu0.b32.cont [12/16] 0.0, 128
        %1249 = vxpose.xlu0.b32.cont [13/16] 0.0, 128
        %1250 = vxpose.xlu0.b32.cont [14/16] 0.0, 128
        %1251 = vxpose.xlu0.b32.cont [15/16] 0.0, 128
        %1252 = vxpose.xlu0.b32.end [16/16] 0.0, 128
        %v1253 = vpop.trf.xlu0
        %v1254 = vpop.trf.xlu0
        %v1255 = vpop.trf.xlu0
        %v1256 = vpop.trf.xlu0
        %v1257 = vpop.trf.xlu0
        %v1258 = vpop.trf.xlu0
        %v1259 = vpop.trf.xlu0
        %v1260 = vpop.trf.xlu0
        %v1261 = vpop.trf.xlu0
        %v1262 = vpop.trf.xlu0
        %v1263 = vpop.trf.xlu0
        %v1264 = vpop.trf.xlu0
        %v1265 = vpop.trf.xlu0
        %v1266 = vpop.trf.xlu0
        %v1267 = vpop.trf.xlu0
        %v1268 = vpop.trf.xlu0
        %1269 = vxpose.xlu0.b32.start [1/16] %v1158, 128
        %1270 = vxpose.xlu0.b32.cont [2/16] 0.0, 128
        %1271 = vxpose.xlu0.b32.cont [3/16] 0.0, 128
        %1272 = vxpose.xlu0.b32.cont [4/16] 0.0, 128
        %1273 = vxpose.xlu0.b32.cont [5/16] 0.0, 128
        %1274 = vxpose.xlu0.b32.cont [6/16] 0.0, 128
        %1275 = vxpose.xlu0.b32.cont [7/16] 0.0, 128
        %1276 = vxpose.xlu0.b32.cont [8/16] 0.0, 128
        %1277 = vxpose.xlu0.b32.cont [9/16] 0.0, 128
        %1278 = vxpose.xlu0.b32.cont [10/16] 0.0, 128
        %1279 = vxpose.xlu0.b32.cont [11/16] 0.0, 128
        %1280 = vxpose.xlu0.b32.cont [12/16] 0.0, 128
        %1281 = vxpose.xlu0.b32.cont [13/16] 0.0, 128
        %1282 = vxpose.xlu0.b32.cont [14/16] 0.0, 128
        %1283 = vxpose.xlu0.b32.cont [15/16] 0.0, 128
        %1284 = vxpose.xlu0.b32.end [16/16] 0.0, 128
        %v1285 = vpop.trf.xlu0
        %v1286 = vpop.trf.xlu0
        %v1287 = vpop.trf.xlu0
        %v1288 = vpop.trf.xlu0
        %v1289 = vpop.trf.xlu0
        %v1290 = vpop.trf.xlu0
        %v1291 = vpop.trf.xlu0
        %v1292 = vpop.trf.xlu0
        %v1293 = vpop.trf.xlu0
        %v1294 = vpop.trf.xlu0
        %v1295 = vpop.trf.xlu0
        %v1296 = vpop.trf.xlu0
        %v1297 = vpop.trf.xlu0
        %v1298 = vpop.trf.xlu0
        %v1299 = vpop.trf.xlu0
        %v1300 = vpop.trf.xlu0
        %1301 = vxpose.xlu0.b32.start [1/16] %v1159, 128
        %1302 = vxpose.xlu0.b32.cont [2/16] 0.0, 128
        %1303 = vxpose.xlu0.b32.cont [3/16] 0.0, 128
        %1304 = vxpose.xlu0.b32.cont [4/16] 0.0, 128
        %1305 = vxpose.xlu0.b32.cont [5/16] 0.0, 128
        %1306 = vxpose.xlu0.b32.cont [6/16] 0.0, 128
        %1307 = vxpose.xlu0.b32.cont [7/16] 0.0, 128
        %1308 = vxpose.xlu0.b32.cont [8/16] 0.0, 128
        %1309 = vxpose.xlu0.b32.cont [9/16] 0.0, 128
        %1310 = vxpose.xlu0.b32.cont [10/16] 0.0, 128
        %1311 = vxpose.xlu0.b32.cont [11/16] 0.0, 128
        %1312 = vxpose.xlu0.b32.cont [12/16] 0.0, 128
        %1313 = vxpose.xlu0.b32.cont [13/16] 0.0, 128
        %1314 = vxpose.xlu0.b32.cont [14/16] 0.0, 128
        %1315 = vxpose.xlu0.b32.cont [15/16] 0.0, 128
        %1316 = vxpose.xlu0.b32.end [16/16] 0.0, 128
        %v1317 = vpop.trf.xlu0
        %v1318 = vpop.trf.xlu0
        %v1319 = vpop.trf.xlu0
        %v1320 = vpop.trf.xlu0
        %v1321 = vpop.trf.xlu0
        %v1322 = vpop.trf.xlu0
        %v1323 = vpop.trf.xlu0
        %v1324 = vpop.trf.xlu0
        %v1325 = vpop.trf.xlu0
        %v1326 = vpop.trf.xlu0
        %v1327 = vpop.trf.xlu0
        %v1328 = vpop.trf.xlu0
        %v1329 = vpop.trf.xlu0
        %v1330 = vpop.trf.xlu0
        %v1331 = vpop.trf.xlu0
        %v1332 = vpop.trf.xlu0
        %1333 = vxpose.xlu0.b32.start [1/16] %v1160, 128
        %1334 = vxpose.xlu0.b32.cont [2/16] 0.0, 128
        %1335 = vxpose.xlu0.b32.cont [3/16] 0.0, 128
        %1336 = vxpose.xlu0.b32.cont [4/16] 0.0, 128
        %1337 = vxpose.xlu0.b32.cont [5/16] 0.0, 128
        %1338 = vxpose.xlu0.b32.cont [6/16] 0.0, 128
        %1339 = vxpose.xlu0.b32.cont [7/16] 0.0, 128
        %1340 = vxpose.xlu0.b32.cont [8/16] 0.0, 128
        %1341 = vxpose.xlu0.b32.cont [9/16] 0.0, 128
        %1342 = vxpose.xlu0.b32.cont [10/16] 0.0, 128
        %1343 = vxpose.xlu0.b32.cont [11/16] 0.0, 128
        %1344 = vxpose.xlu0.b32.cont [12/16] 0.0, 128
        %1345 = vxpose.xlu0.b32.cont [13/16] 0.0, 128
        %1346 = vxpose.xlu0.b32.cont [14/16] 0.0, 128
        %1347 = vxpose.xlu0.b32.cont [15/16] 0.0, 128
        %1348 = vxpose.xlu0.b32.end [16/16] 0.0, 128
        %v1349 = vpop.trf.xlu0
        %v1350 = vpop.trf.xlu0
        %v1351 = vpop.trf.xlu0
        %v1352 = vpop.trf.xlu0
        %v1353 = vpop.trf.xlu0
        %v1354 = vpop.trf.xlu0
        %v1355 = vpop.trf.xlu0
        %v1356 = vpop.trf.xlu0
        %v1357 = vpop.trf.xlu0
        %v1358 = vpop.trf.xlu0
        %v1359 = vpop.trf.xlu0
        %v1360 = vpop.trf.xlu0
        %v1361 = vpop.trf.xlu0
        %v1362 = vpop.trf.xlu0
        %v1363 = vpop.trf.xlu0
        %v1364 = vpop.trf.xlu0
        %v1365 = vpack.c.bf16 %v1253, %v1253
        %v1366 = vpack.c.bf16 %v1285, %v1285
        %v1367 = vpack.c.bf16 %v1317, %v1317
        %v1368 = vpack.c.bf16 %v1349, %v1349
        %1369 = vxpose.xlu0.b32.start [1/16] %v1189, 128
        %1370 = vxpose.xlu0.b32.cont [2/16] 0.0, 128
        %1371 = vxpose.xlu0.b32.cont [3/16] 0.0, 128
        %1372 = vxpose.xlu0.b32.cont [4/16] 0.0, 128
        %1373 = vxpose.xlu0.b32.cont [5/16] 0.0, 128
        %1374 = vxpose.xlu0.b32.cont [6/16] 0.0, 128
        %1375 = vxpose.xlu0.b32.cont [7/16] 0.0, 128
        %1376 = vxpose.xlu0.b32.cont [8/16] 0.0, 128
        %1377 = vxpose.xlu0.b32.cont [9/16] 0.0, 128
        %1378 = vxpose.xlu0.b32.cont [10/16] 0.0, 128
        %1379 = vxpose.xlu0.b32.cont [11/16] 0.0, 128
        %1380 = vxpose.xlu0.b32.cont [12/16] 0.0, 128
        %1381 = vxpose.xlu0.b32.cont [13/16] 0.0, 128
        %1382 = vxpose.xlu0.b32.cont [14/16] 0.0, 128
        %1383 = vxpose.xlu0.b32.cont [15/16] 0.0, 128
        %1384 = vxpose.xlu0.b32.end [16/16] 0.0, 128
        %v1385 = vpop.trf.xlu0
        %v1386 = vpop.trf.xlu0
        %v1387 = vpop.trf.xlu0
        %v1388 = vpop.trf.xlu0
        %v1389 = vpop.trf.xlu0
        %v1390 = vpop.trf.xlu0
        %v1391 = vpop.trf.xlu0
        %v1392 = vpop.trf.xlu0
        %v1393 = vpop.trf.xlu0
        %v1394 = vpop.trf.xlu0
        %v1395 = vpop.trf.xlu0
        %v1396 = vpop.trf.xlu0
        %v1397 = vpop.trf.xlu0
        %v1398 = vpop.trf.xlu0
        %v1399 = vpop.trf.xlu0
        %v1400 = vpop.trf.xlu0
        %1401 = vxpose.xlu0.b32.start [1/16] %v1190, 128
        %1402 = vxpose.xlu0.b32.cont [2/16] 0.0, 128
        %1403 = vxpose.xlu0.b32.cont [3/16] 0.0, 128
        %1404 = vxpose.xlu0.b32.cont [4/16] 0.0, 128
        %1405 = vxpose.xlu0.b32.cont [5/16] 0.0, 128
        %1406 = vxpose.xlu0.b32.cont [6/16] 0.0, 128
        %1407 = vxpose.xlu0.b32.cont [7/16] 0.0, 128
        %1408 = vxpose.xlu0.b32.cont [8/16] 0.0, 128
        %1409 = vxpose.xlu0.b32.cont [9/16] 0.0, 128
        %1410 = vxpose.xlu0.b32.cont [10/16] 0.0, 128
        %1411 = vxpose.xlu0.b32.cont [11/16] 0.0, 128
        %1412 = vxpose.xlu0.b32.cont [12/16] 0.0, 128
        %1413 = vxpose.xlu0.b32.cont [13/16] 0.0, 128
        %1414 = vxpose.xlu0.b32.cont [14/16] 0.0, 128
        %1415 = vxpose.xlu0.b32.cont [15/16] 0.0, 128
        %1416 = vxpose.xlu0.b32.end [16/16] 0.0, 128
        %v1417 = vpop.trf.xlu0
        %v1418 = vpop.trf.xlu0
        %v1419 = vpop.trf.xlu0
        %v1420 = vpop.trf.xlu0
        %v1421 = vpop.trf.xlu0
        %v1422 = vpop.trf.xlu0
        %v1423 = vpop.trf.xlu0
        %v1424 = vpop.trf.xlu0
        %v1425 = vpop.trf.xlu0
        %v1426 = vpop.trf.xlu0
        %v1427 = vpop.trf.xlu0
        %v1428 = vpop.trf.xlu0
        %v1429 = vpop.trf.xlu0
        %v1430 = vpop.trf.xlu0
        %v1431 = vpop.trf.xlu0
        %v1432 = vpop.trf.xlu0
        %1433 = vxpose.xlu0.b32.start [1/16] %v1191, 128
        %1434 = vxpose.xlu0.b32.cont [2/16] 0.0, 128
        %1435 = vxpose.xlu0.b32.cont [3/16] 0.0, 128
        %1436 = vxpose.xlu0.b32.cont [4/16] 0.0, 128
        %1437 = vxpose.xlu0.b32.cont [5/16] 0.0, 128
        %1438 = vxpose.xlu0.b32.cont [6/16] 0.0, 128
        %1439 = vxpose.xlu0.b32.cont [7/16] 0.0, 128
        %1440 = vxpose.xlu0.b32.cont [8/16] 0.0, 128
        %1441 = vxpose.xlu0.b32.cont [9/16] 0.0, 128
        %1442 = vxpose.xlu0.b32.cont [10/16] 0.0, 128
        %1443 = vxpose.xlu0.b32.cont [11/16] 0.0, 128
        %1444 = vxpose.xlu0.b32.cont [12/16] 0.0, 128
        %1445 = vxpose.xlu0.b32.cont [13/16] 0.0, 128
        %1446 = vxpose.xlu0.b32.cont [14/16] 0.0, 128
        %1447 = vxpose.xlu0.b32.cont [15/16] 0.0, 128
        %1448 = vxpose.xlu0.b32.end [16/16] 0.0, 128
        %v1449 = vpop.trf.xlu0
        %v1450 = vpop.trf.xlu0
        %v1451 = vpop.trf.xlu0
        %v1452 = vpop.trf.xlu0
        %v1453 = vpop.trf.xlu0
        %v1454 = vpop.trf.xlu0
        %v1455 = vpop.trf.xlu0
        %v1456 = vpop.trf.xlu0
        %v1457 = vpop.trf.xlu0
        %v1458 = vpop.trf.xlu0
        %v1459 = vpop.trf.xlu0
        %v1460 = vpop.trf.xlu0
        %v1461 = vpop.trf.xlu0
        %v1462 = vpop.trf.xlu0
        %v1463 = vpop.trf.xlu0
        %v1464 = vpop.trf.xlu0
        %1465 = vxpose.xlu0.b32.start [1/16] %v1192, 128
        %1466 = vxpose.xlu0.b32.cont [2/16] 0.0, 128
        %1467 = vxpose.xlu0.b32.cont [3/16] 0.0, 128
        %1468 = vxpose.xlu0.b32.cont [4/16] 0.0, 128
        %1469 = vxpose.xlu0.b32.cont [5/16] 0.0, 128
        %1470 = vxpose.xlu0.b32.cont [6/16] 0.0, 128
        %1471 = vxpose.xlu0.b32.cont [7/16] 0.0, 128
        %1472 = vxpose.xlu0.b32.cont [8/16] 0.0, 128
        %1473 = vxpose.xlu0.b32.cont [9/16] 0.0, 128
        %1474 = vxpose.xlu0.b32.cont [10/16] 0.0, 128
        %1475 = vxpose.xlu0.b32.cont [11/16] 0.0, 128
        %1476 = vxpose.xlu0.b32.cont [12/16] 0.0, 128
        %1477 = vxpose.xlu0.b32.cont [13/16] 0.0, 128
        %1478 = vxpose.xlu0.b32.cont [14/16] 0.0, 128
        %1479 = vxpose.xlu0.b32.cont [15/16] 0.0, 128
        %1480 = vxpose.xlu0.b32.end [16/16] 0.0, 128
        %v1481 = vpop.trf.xlu0
        %v1482 = vpop.trf.xlu0
        %v1483 = vpop.trf.xlu0
        %v1484 = vpop.trf.xlu0
        %v1485 = vpop.trf.xlu0
        %v1486 = vpop.trf.xlu0
        %v1487 = vpop.trf.xlu0
        %v1488 = vpop.trf.xlu0
        %v1489 = vpop.trf.xlu0
        %v1490 = vpop.trf.xlu0
        %v1491 = vpop.trf.xlu0
        %v1492 = vpop.trf.xlu0
        %v1493 = vpop.trf.xlu0
        %v1494 = vpop.trf.xlu0
        %v1495 = vpop.trf.xlu0
        %v1496 = vpop.trf.xlu0
        %v1497 = vpack.c.bf16 %v1385, %v1385
        %v1498 = vpack.c.bf16 %v1417, %v1417
        %v1499 = vpack.c.bf16 %v1449, %v1449
        %v1500 = vpack.c.bf16 %v1481, %v1481
        %vm1501 = vcmask 64512
        %v1503 = vsel %vm1501, %v1365, 0
        %v1506 = vsel %vm1501, %v1497, 0
        %1508 = vmatprep.subr.bf16.mxu0 0
        %1509 = vmatpush1.bf16.xpose.msra.mxu0 0
        %1510 = vmatprep.subr.bf16.mxu0 0
        %1511 = vmatpush1.bf16.xpose.msra.mxu0 0
        %1512 = vmatprep.subr.bf16.mxu0 0
        %1513 = vmatpush1.bf16.xpose.msra.mxu0 0
        %1514 = vmatprep.subr.bf16.mxu0 0
        %1515 = vmatpush1.bf16.xpose.msra.mxu0 0
        %1516 = vmatprep.subr.bf16.mxu0 0
        %1517 = vmatpush1.bf16.xpose.msra.mxu0 0
        %1518 = vmatprep.subr.bf16.mxu0 0
        %1519 = vmatpush1.bf16.xpose.msra.mxu0 0
        %1520 = vmatprep.subr.bf16.mxu0 0
        %1521 = vmatpush1.bf16.xpose.msra.mxu0 0
        %1522 = vmatprep.subr.bf16.mxu0 0
        %1523 = vmatpush1.bf16.xpose.msra.mxu0 %v1506
        %1524 = vmatprep.subr.bf16.mxu0 0
        %1525 = vmatpush2.bf16.xpose.msra.mxu0 0
        %1526 = vmatprep.subr.bf16.mxu0 0
        %1527 = vmatpush2.bf16.xpose.msra.mxu0 0
        %1528 = vmatprep.subr.bf16.mxu0 0
        %1529 = vmatpush2.bf16.xpose.msra.mxu0 0
        %1530 = vmatprep.subr.bf16.mxu0 0
        %1531 = vmatpush2.bf16.xpose.msra.mxu0 0
        %1532 = vmatprep.subr.bf16.mxu0 0
        %1533 = vmatpush2.bf16.xpose.msra.mxu0 0
        %1534 = vmatprep.subr.bf16.mxu0 0
        %1535 = vmatpush2.bf16.xpose.msra.mxu0 0
        %1536 = vmatprep.subr.bf16.mxu0 0
        %1537 = vmatpush2.bf16.xpose.msra.mxu0 0
        %1538 = vmatprep.subr.bf16.mxu0 0
        %1539 = vmatpush2.bf16.xpose.msra.mxu0 0
        %1540 = vmatprep.mubr.bf16.mxu0 0
        %1541 = vmatmul.mubr.bf16.gmra.mxu0 %v1503
        %v1542 = vpop.f32.mrf.mxu0
        %v1543 = vadd.f32 0.0, %v1542
        %v1544 = vpop.f32.mrf.mxu0
        %v1545 = vpop.f32.mrf.mxu0
        %v1546 = vpop.f32.mrf.mxu0
        %1547 = vdwg.mxu0
        %v1549 = vsel %vm1501, %v1366, 0
        %v1552 = vsel %vm1501, %v1498, 0
        %1554 = vmatprep.subr.bf16.mxu0 0
        %1555 = vmatpush1.bf16.xpose.msra.mxu0 0
        %1556 = vmatprep.subr.bf16.mxu0 0
        %1557 = vmatpush1.bf16.xpose.msra.mxu0 0
        %1558 = vmatprep.subr.bf16.mxu0 0
        %1559 = vmatpush1.bf16.xpose.msra.mxu0 0
        %1560 = vmatprep.subr.bf16.mxu0 0
        %1561 = vmatpush1.bf16.xpose.msra.mxu0 0
        %1562 = vmatprep.subr.bf16.mxu0 0
        %1563 = vmatpush1.bf16.xpose.msra.mxu0 0
        %1564 = vmatprep.subr.bf16.mxu0 0
        %1565 = vmatpush1.bf16.xpose.msra.mxu0 0
        %1566 = vmatprep.subr.bf16.mxu0 0
        %1567 = vmatpush1.bf16.xpose.msra.mxu0 0
        %1568 = vmatprep.subr.bf16.mxu0 0
        %1569 = vmatpush1.bf16.xpose.msra.mxu0 %v1552
        %1570 = vmatprep.subr.bf16.mxu0 0
        %1571 = vmatpush2.bf16.xpose.msra.mxu0 0
        %1572 = vmatprep.subr.bf16.mxu0 0
        %1573 = vmatpush2.bf16.xpose.msra.mxu0 0
        %1574 = vmatprep.subr.bf16.mxu0 0
        %1575 = vmatpush2.bf16.xpose.msra.mxu0 0
        %1576 = vmatprep.subr.bf16.mxu0 0
        %1577 = vmatpush2.bf16.xpose.msra.mxu0 0
        %1578 = vmatprep.subr.bf16.mxu0 0
        %1579 = vmatpush2.bf16.xpose.msra.mxu0 0
        %1580 = vmatprep.subr.bf16.mxu0 0
        %1581 = vmatpush2.bf16.xpose.msra.mxu0 0
        %1582 = vmatprep.subr.bf16.mxu0 0
        %1583 = vmatpush2.bf16.xpose.msra.mxu0 0
        %1584 = vmatprep.subr.bf16.mxu0 0
        %1585 = vmatpush2.bf16.xpose.msra.mxu0 0
        %1586 = vmatprep.mubr.bf16.mxu0 0
        %1587 = vmatmul.mubr.bf16.gmra.mxu0 %v1549
        %v1588 = vpop.f32.mrf.mxu0
        %v1589 = vadd.f32 0.0, %v1588
        %v1590 = vpop.f32.mrf.mxu0
        %v1591 = vpop.f32.mrf.mxu0
        %v1592 = vpop.f32.mrf.mxu0
        %1593 = vdwg.mxu0
        %v1595 = vsel %vm1501, %v1367, 0
        %v1598 = vsel %vm1501, %v1499, 0
        %1600 = vmatprep.subr.bf16.mxu0 0
        %1601 = vmatpush1.bf16.xpose.msra.mxu0 0
        %1602 = vmatprep.subr.bf16.mxu0 0
        %1603 = vmatpush1.bf16.xpose.msra.mxu0 0
        %1604 = vmatprep.subr.bf16.mxu0 0
        %1605 = vmatpush1.bf16.xpose.msra.mxu0 0
        %1606 = vmatprep.subr.bf16.mxu0 0
        %1607 = vmatpush1.bf16.xpose.msra.mxu0 0
        %1608 = vmatprep.subr.bf16.mxu0 0
        %1609 = vmatpush1.bf16.xpose.msra.mxu0 0
        %1610 = vmatprep.subr.bf16.mxu0 0
        %1611 = vmatpush1.bf16.xpose.msra.mxu0 0
        %1612 = vmatprep.subr.bf16.mxu0 0
        %1613 = vmatpush1.bf16.xpose.msra.mxu0 0
        %1614 = vmatprep.subr.bf16.mxu0 0
        %1615 = vmatpush1.bf16.xpose.msra.mxu0 %v1598
        %1616 = vmatprep.subr.bf16.mxu0 0
        %1617 = vmatpush2.bf16.xpose.msra.mxu0 0
        %1618 = vmatprep.subr.bf16.mxu0 0
        %1619 = vmatpush2.bf16.xpose.msra.mxu0 0
        %1620 = vmatprep.subr.bf16.mxu0 0
        %1621 = vmatpush2.bf16.xpose.msra.mxu0 0
        %1622 = vmatprep.subr.bf16.mxu0 0
        %1623 = vmatpush2.bf16.xpose.msra.mxu0 0
        %1624 = vmatprep.subr.bf16.mxu0 0
        %1625 = vmatpush2.bf16.xpose.msra.mxu0 0
        %1626 = vmatprep.subr.bf16.mxu0 0
        %1627 = vmatpush2.bf16.xpose.msra.mxu0 0
        %1628 = vmatprep.subr.bf16.mxu0 0
        %1629 = vmatpush2.bf16.xpose.msra.mxu0 0
        %1630 = vmatprep.subr.bf16.mxu0 0
        %1631 = vmatpush2.bf16.xpose.msra.mxu0 0
        %1632 = vmatprep.mubr.bf16.mxu0 0
        %1633 = vmatmul.mubr.bf16.gmra.mxu0 %v1595
        %v1634 = vpop.f32.mrf.mxu0
        %v1635 = vadd.f32 0.0, %v1634
        %v1636 = vpop.f32.mrf.mxu0
        %v1637 = vpop.f32.mrf.mxu0
        %v1638 = vpop.f32.mrf.mxu0
        %1639 = vdwg.mxu0
        %v1641 = vsel %vm1501, %v1368, 0
        %v1644 = vsel %vm1501, %v1500, 0
        %1646 = vmatprep.subr.bf16.mxu0 0
        %1647 = vmatpush1.bf16.xpose.msra.mxu0 0
        %1648 = vmatprep.subr.bf16.mxu0 0
        %1649 = vmatpush1.bf16.xpose.msra.mxu0 0
        %1650 = vmatprep.subr.bf16.mxu0 0
        %1651 = vmatpush1.bf16.xpose.msra.mxu0 0
        %1652 = vmatprep.subr.bf16.mxu0 0
        %1653 = vmatpush1.bf16.xpose.msra.mxu0 0
        %1654 = vmatprep.subr.bf16.mxu0 0
        %1655 = vmatpush1.bf16.xpose.msra.mxu0 0
        %1656 = vmatprep.subr.bf16.mxu0 0
        %1657 = vmatpush1.bf16.xpose.msra.mxu0 0
        %1658 = vmatprep.subr.bf16.mxu0 0
        %1659 = vmatpush1.bf16.xpose.msra.mxu0 0
        %1660 = vmatprep.subr.bf16.mxu0 0
        %1661 = vmatpush1.bf16.xpose.msra.mxu0 %v1644
        %1662 = vmatprep.subr.bf16.mxu0 0
        %1663 = vmatpush2.bf16.xpose.msra.mxu0 0
        %1664 = vmatprep.subr.bf16.mxu0 0
        %1665 = vmatpush2.bf16.xpose.msra.mxu0 0
        %1666 = vmatprep.subr.bf16.mxu0 0
        %1667 = vmatpush2.bf16.xpose.msra.mxu0 0
        %1668 = vmatprep.subr.bf16.mxu0 0
        %1669 = vmatpush2.bf16.xpose.msra.mxu0 0
        %1670 = vmatprep.subr.bf16.mxu0 0
        %1671 = vmatpush2.bf16.xpose.msra.mxu0 0
        %1672 = vmatprep.subr.bf16.mxu0 0
        %1673 = vmatpush2.bf16.xpose.msra.mxu0 0
        %1674 = vmatprep.subr.bf16.mxu0 0
        %1675 = vmatpush2.bf16.xpose.msra.mxu0 0
        %1676 = vmatprep.subr.bf16.mxu0 0
        %1677 = vmatpush2.bf16.xpose.msra.mxu0 0
        %1678 = vmatprep.mubr.bf16.mxu0 0
        %1679 = vmatmul.mubr.bf16.gmra.mxu0 %v1641
        %v1680 = vpop.f32.mrf.mxu0
        %v1681 = vadd.f32 0.0, %v1680
        %v1682 = vpop.f32.mrf.mxu0
        %v1683 = vpop.f32.mrf.mxu0
        %v1684 = vpop.f32.mrf.mxu0
        %1685 = vdwg.mxu0
        %v1686 = vsel %vm907, 1, 0
        %v1687 = vlaneseq
        %v1688 = vshrl.u32 %v1687, 7
        %v1689 = vsub.s32 0, %v1688
        %v1690 = vrot.slane %v1686, %v1689
        %vm1691 = vcmp.eq.s32.totalorder %v1690, 1
        %v1692 = vsel %vm1691, %v1543, -1e+09
        %v1693 = vsel %vm1691, %v1589, -1e+09
        %v1694 = vsel %vm1691, %v1635, -1e+09
        %v1695 = vsel %vm1691, %v1681, -1e+09
        %v1696 = vsel %vm1501, %v1692, -inf
        %1697 = vmax.xlane.f32.xlu0 %v1696
        %v1698 = vpop.xlane.xlu0 %1697
        %v1699 = vsel %vm1501, %v1693, -inf
        %1700 = vmax.xlane.f32.xlu0 %v1699
        %v1701 = vpop.xlane.xlu0 %1700
        %v1702 = vsel %vm1501, %v1694, -inf
        %1703 = vmax.xlane.f32.xlu0 %v1702
        %v1704 = vpop.xlane.xlu0 %1703
        %v1705 = vsel %vm1501, %v1695, -inf
        %1706 = vmax.xlane.f32.xlu0 %v1705
        %v1707 = vpop.xlane.xlu0 %1706
        %v1708 = vsub.f32 %v1692, %v1698
        %v1709 = vsub.f32 %v1693, %v1701
        %v1710 = vsub.f32 %v1694, %v1704
        %v1711 = vsub.f32 %v1695, %v1707
        %v1712 = vmul.f32 %v1708, 1.442695
        %v1713 = vpow.pop %v1712
        %v1714 = vmul.f32 %v1709, 1.442695
        %v1715 = vpow.pop %v1714
        %v1716 = vmul.f32 %v1710, 1.442695
        %v1717 = vpow.pop %v1716
        %v1718 = vmul.f32 %v1711, 1.442695
        %v1719 = vpow.pop %v1718
        %v1720 = vsel %vm1501, %v1713, 0.0
        %1721 = vadd.xlane.f32.xlu0 %v1720
        %v1722 = vpop.xlane.xlu0 %1721
        %v1723 = vsel %vm1501, %v1715, 0.0
        %1724 = vadd.xlane.f32.xlu0 %v1723
        %v1725 = vpop.xlane.xlu0 %1724
        %v1726 = vsel %vm1501, %v1717, 0.0
        %1727 = vadd.xlane.f32.xlu0 %v1726
        %v1728 = vpop.xlane.xlu0 %1727
        %v1729 = vsel %vm1501, %v1719, 0.0
        %1730 = vadd.xlane.f32.xlu0 %v1729
        %v1731 = vpop.xlane.xlu0 %1730
        %v1732 = vrcp.pop %v1722
        %v1733 = vrcp.pop %v1725
        %v1734 = vrcp.pop %v1728
        %v1735 = vrcp.pop %v1731
        %v1736 = vmul.f32 %v1713, %v1732
        %v1737 = vmul.f32 %v1715, %v1733
        %v1738 = vmul.f32 %v1717, %v1734
        %v1739 = vmul.f32 %v1719, %v1735
        %v1740 = vpack.c.bf16 %v1221, %v1221
        %v1741 = vpack.c.bf16 %v1222, %v1222
        %v1742 = vpack.c.bf16 %v1223, %v1223
        %v1743 = vpack.c.bf16 %v1224, %v1224
        %v1744 = vpack.c.bf16 %v1736, %v1736
        %v1745 = vpack.c.bf16 %v1737, %v1737
        %v1746 = vpack.c.bf16 %v1738, %v1738
        %v1747 = vpack.c.bf16 %v1739, %v1739
        %v1749 = vsel %vm1501, %v1740, 0
        %v1752 = vsel %vm1501, %v1744, 0
        %1754 = vmatprep.subr.bf16.mxu0 0
        %1755 = vmatpush1.bf16.xpose.msra.mxu0 0
        %1756 = vmatprep.subr.bf16.mxu0 0
        %1757 = vmatpush1.bf16.xpose.msra.mxu0 0
        %1758 = vmatprep.subr.bf16.mxu0 0
        %1759 = vmatpush1.bf16.xpose.msra.mxu0 0
        %1760 = vmatprep.subr.bf16.mxu0 0
        %1761 = vmatpush1.bf16.xpose.msra.mxu0 0
        %1762 = vmatprep.subr.bf16.mxu0 0
        %1763 = vmatpush1.bf16.xpose.msra.mxu0 0
        %1764 = vmatprep.subr.bf16.mxu0 0
        %1765 = vmatpush1.bf16.xpose.msra.mxu0 0
        %1766 = vmatprep.subr.bf16.mxu0 0
        %1767 = vmatpush1.bf16.xpose.msra.mxu0 0
        %1768 = vmatprep.subr.bf16.mxu0 0
        %1769 = vmatpush1.bf16.xpose.msra.mxu0 %v1752
        %1770 = vmatprep.subr.bf16.mxu0 0
        %1771 = vmatpush2.bf16.xpose.msra.mxu0 0
        %1772 = vmatprep.subr.bf16.mxu0 0
        %1773 = vmatpush2.bf16.xpose.msra.mxu0 0
        %1774 = vmatprep.subr.bf16.mxu0 0
        %1775 = vmatpush2.bf16.xpose.msra.mxu0 0
        %1776 = vmatprep.subr.bf16.mxu0 0
        %1777 = vmatpush2.bf16.xpose.msra.mxu0 0
        %1778 = vmatprep.subr.bf16.mxu0 0
        %1779 = vmatpush2.bf16.xpose.msra.mxu0 0
        %1780 = vmatprep.subr.bf16.mxu0 0
        %1781 = vmatpush2.bf16.xpose.msra.mxu0 0
        %1782 = vmatprep.subr.bf16.mxu0 0
        %1783 = vmatpush2.bf16.xpose.msra.mxu0 0
        %1784 = vmatprep.subr.bf16.mxu0 0
        %1785 = vmatpush2.bf16.xpose.msra.mxu0 0
        %1786 = vmatprep.mubr.bf16.mxu0 0
        %1787 = vmatmul.mubr.bf16.gmra.mxu0 %v1749
        %v1788 = vpop.f32.mrf.mxu0
        %v1789 = vadd.f32 0.0, %v1788
        %v1790 = vpop.f32.mrf.mxu0
        %v1791 = vpop.f32.mrf.mxu0
        %v1792 = vpop.f32.mrf.mxu0
        %1793 = vdwg.mxu0
        %v1795 = vsel %vm1501, %v1741, 0
        %v1798 = vsel %vm1501, %v1745, 0
        %1800 = vmatprep.subr.bf16.mxu0 0
        %1801 = vmatpush1.bf16.xpose.msra.mxu0 0
        %1802 = vmatprep.subr.bf16.mxu0 0
        %1803 = vmatpush1.bf16.xpose.msra.mxu0 0
        %1804 = vmatprep.subr.bf16.mxu0 0
        %1805 = vmatpush1.bf16.xpose.msra.mxu0 0
        %1806 = vmatprep.subr.bf16.mxu0 0
        %1807 = vmatpush1.bf16.xpose.msra.mxu0 0
        %1808 = vmatprep.subr.bf16.mxu0 0
        %1809 = vmatpush1.bf16.xpose.msra.mxu0 0
        %1810 = vmatprep.subr.bf16.mxu0 0
        %1811 = vmatpush1.bf16.xpose.msra.mxu0 0
        %1812 = vmatprep.subr.bf16.mxu0 0
        %1813 = vmatpush1.bf16.xpose.msra.mxu0 0
        %1814 = vmatprep.subr.bf16.mxu0 0
        %1815 = vmatpush1.bf16.xpose.msra.mxu0 %v1798
        %1816 = vmatprep.subr.bf16.mxu0 0
        %1817 = vmatpush2.bf16.xpose.msra.mxu0 0
        %1818 = vmatprep.subr.bf16.mxu0 0
        %1819 = vmatpush2.bf16.xpose.msra.mxu0 0
        %1820 = vmatprep.subr.bf16.mxu0 0
        %1821 = vmatpush2.bf16.xpose.msra.mxu0 0
        %1822 = vmatprep.subr.bf16.mxu0 0
        %1823 = vmatpush2.bf16.xpose.msra.mxu0 0
        %1824 = vmatprep.subr.bf16.mxu0 0
        %1825 = vmatpush2.bf16.xpose.msra.mxu0 0
        %1826 = vmatprep.subr.bf16.mxu0 0
        %1827 = vmatpush2.bf16.xpose.msra.mxu0 0
        %1828 = vmatprep.subr.bf16.mxu0 0
        %1829 = vmatpush2.bf16.xpose.msra.mxu0 0
        %1830 = vmatprep.subr.bf16.mxu0 0
        %1831 = vmatpush2.bf16.xpose.msra.mxu0 0
        %1832 = vmatprep.mubr.bf16.mxu0 0
        %1833 = vmatmul.mubr.bf16.gmra.mxu0 %v1795
        %v1834 = vpop.f32.mrf.mxu0
        %v1835 = vadd.f32 0.0, %v1834
        %v1836 = vpop.f32.mrf.mxu0
        %v1837 = vpop.f32.mrf.mxu0
        %v1838 = vpop.f32.mrf.mxu0
        %1839 = vdwg.mxu0
        %v1841 = vsel %vm1501, %v1742, 0
        %v1844 = vsel %vm1501, %v1746, 0
        %1846 = vmatprep.subr.bf16.mxu0 0
        %1847 = vmatpush1.bf16.xpose.msra.mxu0 0
        %1848 = vmatprep.subr.bf16.mxu0 0
        %1849 = vmatpush1.bf16.xpose.msra.mxu0 0
        %1850 = vmatprep.subr.bf16.mxu0 0
        %1851 = vmatpush1.bf16.xpose.msra.mxu0 0
        %1852 = vmatprep.subr.bf16.mxu0 0
        %1853 = vmatpush1.bf16.xpose.msra.mxu0 0
        %1854 = vmatprep.subr.bf16.mxu0 0
        %1855 = vmatpush1.bf16.xpose.msra.mxu0 0
        %1856 = vmatprep.subr.bf16.mxu0 0
        %1857 = vmatpush1.bf16.xpose.msra.mxu0 0
        %1858 = vmatprep.subr.bf16.mxu0 0
        %1859 = vmatpush1.bf16.xpose.msra.mxu0 0
        %1860 = vmatprep.subr.bf16.mxu0 0
        %1861 = vmatpush1.bf16.xpose.msra.mxu0 %v1844
        %1862 = vmatprep.subr.bf16.mxu0 0
        %1863 = vmatpush2.bf16.xpose.msra.mxu0 0
        %1864 = vmatprep.subr.bf16.mxu0 0
        %1865 = vmatpush2.bf16.xpose.msra.mxu0 0
        %1866 = vmatprep.subr.bf16.mxu0 0
        %1867 = vmatpush2.bf16.xpose.msra.mxu0 0
        %1868 = vmatprep.subr.bf16.mxu0 0
        %1869 = vmatpush2.bf16.xpose.msra.mxu0 0
        %1870 = vmatprep.subr.bf16.mxu0 0
        %1871 = vmatpush2.bf16.xpose.msra.mxu0 0
        %1872 = vmatprep.subr.bf16.mxu0 0
        %1873 = vmatpush2.bf16.xpose.msra.mxu0 0
        %1874 = vmatprep.subr.bf16.mxu0 0
        %1875 = vmatpush2.bf16.xpose.msra.mxu0 0
        %1876 = vmatprep.subr.bf16.mxu0 0
        %1877 = vmatpush2.bf16.xpose.msra.mxu0 0
        %1878 = vmatprep.mubr.bf16.mxu0 0
        %1879 = vmatmul.mubr.bf16.gmra.mxu0 %v1841
        %v1880 = vpop.f32.mrf.mxu0
        %v1881 = vadd.f32 0.0, %v1880
        %v1882 = vpop.f32.mrf.mxu0
        %v1883 = vpop.f32.mrf.mxu0
        %v1884 = vpop.f32.mrf.mxu0
        %1885 = vdwg.mxu0
        %v1887 = vsel %vm1501, %v1743, 0
        %v1890 = vsel %vm1501, %v1747, 0
        %1892 = vmatprep.subr.bf16.mxu0 0
        %1893 = vmatpush1.bf16.xpose.msra.mxu0 0
        %1894 = vmatprep.subr.bf16.mxu0 0
        %1895 = vmatpush1.bf16.xpose.msra.mxu0 0
        %1896 = vmatprep.subr.bf16.mxu0 0
        %1897 = vmatpush1.bf16.xpose.msra.mxu0 0
        %1898 = vmatprep.subr.bf16.mxu0 0
        %1899 = vmatpush1.bf16.xpose.msra.mxu0 0
        %1900 = vmatprep.subr.bf16.mxu0 0
        %1901 = vmatpush1.bf16.xpose.msra.mxu0 0
        %1902 = vmatprep.subr.bf16.mxu0 0
        %1903 = vmatpush1.bf16.xpose.msra.mxu0 0
        %1904 = vmatprep.subr.bf16.mxu0 0
        %1905 = vmatpush1.bf16.xpose.msra.mxu0 0
        %1906 = vmatprep.subr.bf16.mxu0 0
        %1907 = vmatpush1.bf16.xpose.msra.mxu0 %v1890
        %1908 = vmatprep.subr.bf16.mxu0 0
        %1909 = vmatpush2.bf16.xpose.msra.mxu0 0
        %1910 = vmatprep.subr.bf16.mxu0 0
        %1911 = vmatpush2.bf16.xpose.msra.mxu0 0
        %1912 = vmatprep.subr.bf16.mxu0 0
        %1913 = vmatpush2.bf16.xpose.msra.mxu0 0
        %1914 = vmatprep.subr.bf16.mxu0 0
        %1915 = vmatpush2.bf16.xpose.msra.mxu0 0
        %1916 = vmatprep.subr.bf16.mxu0 0
        %1917 = vmatpush2.bf16.xpose.msra.mxu0 0
        %1918 = vmatprep.subr.bf16.mxu0 0
        %1919 = vmatpush2.bf16.xpose.msra.mxu0 0
        %1920 = vmatprep.subr.bf16.mxu0 0
        %1921 = vmatpush2.bf16.xpose.msra.mxu0 0
        %1922 = vmatprep.subr.bf16.mxu0 0
        %1923 = vmatpush2.bf16.xpose.msra.mxu0 0
        %1924 = vmatprep.mubr.bf16.mxu0 0
        %1925 = vmatmul.mubr.bf16.gmra.mxu0 %v1887
        %v1926 = vpop.f32.mrf.mxu0
        %v1927 = vadd.f32 0.0, %v1926
        %v1928 = vpop.f32.mrf.mxu0
        %v1929 = vpop.f32.mrf.mxu0
        %v1930 = vpop.f32.mrf.mxu0
        %1931 = vdwg.mxu0
        %1932 = vxpose.xlu0.b32.start [1/16] %v1789, 128
        %1933 = vxpose.xlu0.b32.cont [2/16] %v1835, 128
        %1934 = vxpose.xlu0.b32.cont [3/16] %v1881, 128
        %1935 = vxpose.xlu0.b32.cont [4/16] %v1927, 128
        %1936 = vxpose.xlu0.b32.cont [5/16] 0.0, 128
        %1937 = vxpose.xlu0.b32.cont [6/16] 0.0, 128
        %1938 = vxpose.xlu0.b32.cont [7/16] 0.0, 128
        %1939 = vxpose.xlu0.b32.cont [8/16] 0.0, 128
        %1940 = vxpose.xlu0.b32.cont [9/16] 0.0, 128
        %1941 = vxpose.xlu0.b32.cont [10/16] 0.0, 128
        %1942 = vxpose.xlu0.b32.cont [11/16] 0.0, 128
        %1943 = vxpose.xlu0.b32.cont [12/16] 0.0, 128
        %1944 = vxpose.xlu0.b32.cont [13/16] 0.0, 128
        %1945 = vxpose.xlu0.b32.cont [14/16] 0.0, 128
        %1946 = vxpose.xlu0.b32.cont [15/16] 0.0, 128
        %1947 = vxpose.xlu0.b32.end [16/16] 0.0, 128
        %v1948 = vpop.trf.xlu0
        %v1949 = vpop.trf.xlu0
        %v1950 = vpop.trf.xlu0
        %v1951 = vpop.trf.xlu0
        %v1952 = vpop.trf.xlu0
        %v1953 = vpop.trf.xlu0
        %v1954 = vpop.trf.xlu0
        %v1955 = vpop.trf.xlu0
        %v1956 = vpop.trf.xlu0
        %v1957 = vpop.trf.xlu0
        %v1958 = vpop.trf.xlu0
        %v1959 = vpop.trf.xlu0
        %v1960 = vpop.trf.xlu0
        %v1961 = vpop.trf.xlu0
        %v1962 = vpop.trf.xlu0
        %v1963 = vpop.trf.xlu0
        %v1964 = vpack.c.bf16 %v1948, %v1948
        %v1965 = vld [vmem:[%s865] sm:$0xf]
        %v1966 = vld [vmem:[%s865 + $0x4] sm:$0xf]
        %v1967 = vld [vmem:[%s865 + $0x8] sm:$0xf]
        %v1968 = vld [vmem:[%s865 + $0xc] sm:$0xf]
        %v1969 = vld [vmem:[%s868] sm:$0x1]
        %v1971 = vlaneseq
        %v1972 = vshrl.u32 %v1971, 7
        %v1973 = vsub.s32 0, %v1972
        %v1974 = vrot.slane %v1969, %v1973
        %v1980 = vunpack.c.l.b16 %v1965
        %v1981 = vunpack.c.l.b16 %v1966
        %v1982 = vunpack.c.l.b16 %v1967
        %v1983 = vunpack.c.l.b16 %v1968
        %v1984 = vpack.c.b16 %v1981, %v1980
        %v1985 = vpack.c.b16 %v1983, %v1982
        %v1989 = vsel %vm910, %v1964, 0
        %1991 = vmatprep.subr.bf16.mxu0 0
        %1992 = vmatpush1.bf16.msra.mxu0 0
        %1993 = vmatprep.subr.bf16.mxu0 0
        %1994 = vmatpush1.bf16.msra.mxu0 0
        %1995 = vmatprep.subr.bf16.mxu0 0
        %1996 = vmatpush1.bf16.msra.mxu0 0
        %1997 = vmatprep.subr.bf16.mxu0 0
        %1998 = vmatpush1.bf16.msra.mxu0 0
        %1999 = vmatprep.subr.bf16.mxu0 0
        %2000 = vmatpush1.bf16.msra.mxu0 0
        %2001 = vmatprep.subr.bf16.mxu0 0
        %2002 = vmatpush1.bf16.msra.mxu0 0
        %2003 = vmatprep.subr.bf16.mxu0 0
        %2004 = vmatpush1.bf16.msra.mxu0 %v1985
        %2005 = vmatprep.subr.bf16.mxu0 0
        %2006 = vmatpush1.bf16.msra.mxu0 %v1984
        %2007 = vmatprep.subr.bf16.mxu0 0
        %2008 = vmatpush2.bf16.msra.mxu0 0
        %2009 = vmatprep.subr.bf16.mxu0 0
        %2010 = vmatpush2.bf16.msra.mxu0 0
        %2011 = vmatprep.subr.bf16.mxu0 0
        %2012 = vmatpush2.bf16.msra.mxu0 0
        %2013 = vmatprep.subr.bf16.mxu0 0
        %2014 = vmatpush2.bf16.msra.mxu0 0
        %2015 = vmatprep.subr.bf16.mxu0 0
        %2016 = vmatpush2.bf16.msra.mxu0 0
        %2017 = vmatprep.subr.bf16.mxu0 0
        %2018 = vmatpush2.bf16.msra.mxu0 0
        %2019 = vmatprep.subr.bf16.mxu0 0
        %2020 = vmatpush2.bf16.msra.mxu0 0
        %2021 = vmatprep.subr.bf16.mxu0 0
        %2022 = vmatpush2.bf16.msra.mxu0 0
        %2023 = vmatprep.mubr.bf16.mxu0 0
        %2024 = vmatmul.mubr.bf16.gmra.mxu0 %v1989
        %v2025 = vpop.f32.mrf.mxu0
        %v2026 = vadd.f32 %v1974, %v2025
        %v2027 = vpop.f32.mrf.mxu0
        %v2028 = vpop.f32.mrf.mxu0
        %v2029 = vpop.f32.mrf.mxu0
        %2030 = vdwg.mxu0
        %v2031 = vadd.f32 %v905, %v2026
        %v2032 = vld [vmem:[%s893] sm:$0x1]
        %v2033 = vld [vmem:[%s896] sm:$0x1]
        %v2034 = vsel %vm910, %v2031, 0.0
        %2035 = vadd.xlane.f32.xlu0 %v2034
        %v2036 = vpop.xlane.xlu0 %2035
        %v2037 = vmul.f32 %v2036, %v914
        %v2038 = vsub.f32 %v2031, %v2037
        %v2039 = vmul.f32 %v2038, %v2038
        %v2040 = vsel %vm910, %v2039, 0.0
        %2041 = vadd.xlane.f32.xlu0 %v2040
        %v2042 = vpop.xlane.xlu0 %2041
        %v2043 = vmul.f32 %v2042, %v921
        %v2044 = vrsqrt.pop %v2043
        %v2045 = vmul.f32 %v2043, %v2044
        %vm2046 = vcmp.eq.f32.partialorder %v2043, inf
        %v2047 = vsel %vm2046, %v2043, %v2045
        %vm2048 = vcmp.eq.f32.partialorder %v2043, 0.0
        %v2049 = vand.u32 %v2043, 2147483648
        %v2050 = vsel %vm2048, %v2049, %v2047
        %v2051 = vadd.f32 %v2050, 1e-06
        %v2052 = vrcp.pop %v2051
        %v2054 = vlaneseq
        %v2055 = vshrl.u32 %v2054, 7
        %v2056 = vsub.s32 0, %v2055
        %v2057 = vrot.slane %v2032, %v2056
        %v2059 = vmul.f32 %v2057, %v2038
        %v2060 = vmul.f32 %v2059, %v2052
        %v2062 = vlaneseq
        %v2063 = vshrl.u32 %v2062, 7
        %v2064 = vsub.s32 0, %v2063
        %v2065 = vrot.slane %v2033, %v2064
        %v2067 = vadd.f32 %v2060, %v2065
        %v2068 = vpack.c.bf16 %v2067, %v2067
        %v2069 = vld [vmem:[%s873] sm:$0xf]
        %v2070 = vld [vmem:[%s873 + $0x4] sm:$0xf]
        %v2071 = vld [vmem:[%s873 + $0x8] sm:$0xf]
        %v2072 = vld [vmem:[%s873 + $0xc] sm:$0xf]
        %v2073 = vld [vmem:[%s876] sm:$0x1]
        %v2075 = vlaneseq
        %v2076 = vshrl.u32 %v2075, 7
        %v2077 = vsub.s32 0, %v2076
        %v2078 = vrot.slane %v2073, %v2077
        %v2084 = vunpack.c.l.b16 %v2069
        %v2085 = vunpack.c.l.b16 %v2070
        %v2086 = vunpack.c.l.b16 %v2071
        %v2087 = vunpack.c.l.b16 %v2072
        %v2088 = vpack.c.b16 %v2085, %v2084
        %v2089 = vpack.c.b16 %v2087, %v2086
        %v2093 = vsel %vm910, %v2068, 0
        %2095 = vmatprep.subr.bf16.mxu0 0
        %2096 = vmatpush1.bf16.msra.mxu0 0
        %2097 = vmatprep.subr.bf16.mxu0 0
        %2098 = vmatpush1.bf16.msra.mxu0 0
        %2099 = vmatprep.subr.bf16.mxu0 0
        %2100 = vmatpush1.bf16.msra.mxu0 0
        %2101 = vmatprep.subr.bf16.mxu0 0
        %2102 = vmatpush1.bf16.msra.mxu0 0
        %2103 = vmatprep.subr.bf16.mxu0 0
        %2104 = vmatpush1.bf16.msra.mxu0 0
        %2105 = vmatprep.subr.bf16.mxu0 0
        %2106 = vmatpush1.bf16.msra.mxu0 0
        %2107 = vmatprep.subr.bf16.mxu0 0
        %2108 = vmatpush1.bf16.msra.mxu0 %v2089
        %2109 = vmatprep.subr.bf16.mxu0 0
        %2110 = vmatpush1.bf16.msra.mxu0 %v2088
        %2111 = vmatprep.subr.bf16.mxu0 0
        %2112 = vmatpush2.bf16.msra.mxu0 0
        %2113 = vmatprep.subr.bf16.mxu0 0
        %2114 = vmatpush2.bf16.msra.mxu0 0
        %2115 = vmatprep.subr.bf16.mxu0 0
        %2116 = vmatpush2.bf16.msra.mxu0 0
        %2117 = vmatprep.subr.bf16.mxu0 0
        %2118 = vmatpush2.bf16.msra.mxu0 0
        %2119 = vmatprep.subr.bf16.mxu0 0
        %2120 = vmatpush2.bf16.msra.mxu0 0
        %2121 = vmatprep.subr.bf16.mxu0 0
        %2122 = vmatpush2.bf16.msra.mxu0 0
        %2123 = vmatprep.subr.bf16.mxu0 0
        %2124 = vmatpush2.bf16.msra.mxu0 0
        %2125 = vmatprep.subr.bf16.mxu0 0
        %2126 = vmatpush2.bf16.msra.mxu0 0
        %2127 = vmatprep.mubr.bf16.mxu0 0
        %2128 = vmatmul.mubr.bf16.gmra.mxu0 %v2093
        %v2129 = vpop.f32.mrf.mxu0
        %v2130 = vadd.f32 %v2078, %v2129
        %v2131 = vpop.f32.mrf.mxu0
        %v2132 = vpop.f32.mrf.mxu0
        %v2133 = vpop.f32.mrf.mxu0
        %2134 = vdwg.mxu0
        %v2135 = vmul.f32 %v2130, 0.5
        %v2136 = vmul.f32 %v2130, 0.044715
        %v2137 = vmul.f32 %v2136, %v2130
        %v2138 = vmul.f32 %v2137, %v2130
        %v2139 = vadd.f32 %v2130, %v2138
        %v2140 = vmul.f32 %v2139, 0.7978846
        %v2141 = vtanh.pop %v2140
        %v2142 = vadd.f32 %v2141, 1.0
        %v2143 = vmul.f32 %v2135, %v2142
        %v2144 = vpack.c.bf16 %v2143, %v2143
        %v2145 = vld [vmem:[%s881] sm:$0xf]
        %v2146 = vld [vmem:[%s881 + $0x4] sm:$0xf]
        %v2147 = vld [vmem:[%s881 + $0x8] sm:$0xf]
        %v2148 = vld [vmem:[%s881 + $0xc] sm:$0xf]
        %v2149 = vld [vmem:[%s881 + $0x10] sm:$0xf]
        %v2150 = vld [vmem:[%s881 + $0x14] sm:$0xf]
        %v2151 = vld [vmem:[%s881 + $0x18] sm:$0xf]
        %v2152 = vld [vmem:[%s881 + $0x1c] sm:$0xf]
        %v2153 = vld [vmem:[%s881 + $0x20] sm:$0xf]
        %v2154 = vld [vmem:[%s881 + $0x24] sm:$0xf]
        %v2155 = vld [vmem:[%s881 + $0x28] sm:$0xf]
        %v2156 = vld [vmem:[%s881 + $0x2c] sm:$0xf]
        %v2157 = vld [vmem:[%s881 + $0x30] sm:$0xf]
        %v2158 = vld [vmem:[%s881 + $0x34] sm:$0xf]
        %v2159 = vld [vmem:[%s881 + $0x38] sm:$0xf]
        %v2160 = vld [vmem:[%s881 + $0x3c] sm:$0xf]
        %v2161 = vld [vmem:[%s884] sm:$0x1]
        %v2163 = vlaneseq
        %v2164 = vshrl.u32 %v2163, 7
        %v2165 = vsub.s32 0, %v2164
        %v2166 = vrot.slane %v2161, %v2165
        %v2184 = vunpack.c.l.b16 %v2145
        %v2185 = vunpack.c.l.b16 %v2146
        %v2186 = vunpack.c.l.b16 %v2147
        %v2187 = vunpack.c.l.b16 %v2148
        %v2188 = vunpack.c.l.b16 %v2149
        %v2189 = vunpack.c.l.b16 %v2150
        %v2190 = vunpack.c.l.b16 %v2151
        %v2191 = vunpack.c.l.b16 %v2152
        %v2192 = vunpack.c.l.b16 %v2153
        %v2193 = vunpack.c.l.b16 %v2154
        %v2194 = vunpack.c.l.b16 %v2155
        %v2195 = vunpack.c.l.b16 %v2156
        %v2196 = vunpack.c.l.b16 %v2157
        %v2197 = vunpack.c.l.b16 %v2158
        %v2198 = vunpack.c.l.b16 %v2159
        %v2199 = vunpack.c.l.b16 %v2160
        %v2200 = vpack.c.b16 %v2185, %v2184
        %v2201 = vpack.c.b16 %v2187, %v2186
        %v2202 = vpack.c.b16 %v2189, %v2188
        %v2203 = vpack.c.b16 %v2191, %v2190
        %v2204 = vpack.c.b16 %v2193, %v2192
        %v2205 = vpack.c.b16 %v2195, %v2194
        %v2206 = vpack.c.b16 %v2197, %v2196
        %v2207 = vpack.c.b16 %v2199, %v2198
        %2216 = vmatprep.subr.bf16.mxu0 0
        %2217 = vmatpush1.bf16.msra.mxu0 %v2207
        %2218 = vmatprep.subr.bf16.mxu0 0
        %2219 = vmatpush1.bf16.msra.mxu0 %v2206
        %2220 = vmatprep.subr.bf16.mxu0 0
        %2221 = vmatpush1.bf16.msra.mxu0 %v2205
        %2222 = vmatprep.subr.bf16.mxu0 0
        %2223 = vmatpush1.bf16.msra.mxu0 %v2204
        %2224 = vmatprep.subr.bf16.mxu0 0
        %2225 = vmatpush1.bf16.msra.mxu0 %v2203
        %2226 = vmatprep.subr.bf16.mxu0 0
        %2227 = vmatpush1.bf16.msra.mxu0 %v2202
        %2228 = vmatprep.subr.bf16.mxu0 0
        %2229 = vmatpush1.bf16.msra.mxu0 %v2201
        %2230 = vmatprep.subr.bf16.mxu0 0
        %2231 = vmatpush1.bf16.msra.mxu0 %v2200
        %2232 = vmatprep.subr.bf16.mxu0 0
        %2233 = vmatpush2.bf16.msra.mxu0 0
        %2234 = vmatprep.subr.bf16.mxu0 0
        %2235 = vmatpush2.bf16.msra.mxu0 0
        %2236 = vmatprep.subr.bf16.mxu0 0
        %2237 = vmatpush2.bf16.msra.mxu0 0
        %2238 = vmatprep.subr.bf16.mxu0 0
        %2239 = vmatpush2.bf16.msra.mxu0 0
        %2240 = vmatprep.subr.bf16.mxu0 0
        %2241 = vmatpush2.bf16.msra.mxu0 0
        %2242 = vmatprep.subr.bf16.mxu0 0
        %2243 = vmatpush2.bf16.msra.mxu0 0
        %2244 = vmatprep.subr.bf16.mxu0 0
        %2245 = vmatpush2.bf16.msra.mxu0 0
        %2246 = vmatprep.subr.bf16.mxu0 0
        %2247 = vmatpush2.bf16.msra.mxu0 0
        %2248 = vmatprep.mubr.bf16.mxu0 0
        %2249 = vmatmul.mubr.bf16.gmra.mxu0 %v2144
        %v2250 = vpop.f32.mrf.mxu0
        %v2251 = vadd.f32 %v2166, %v2250
        %v2252 = vpop.f32.mrf.mxu0
        %v2253 = vpop.f32.mrf.mxu0
        %v2254 = vpop.f32.mrf.mxu0
        %2255 = vdwg.mxu0
        %v2256 = vadd.f32 %v2031, %v2251
        %2257 = vst.msk [vmem:[%s836] sm:$0xff] %vm910, %v2256
        %s2258 = sand.u32 %s526, 1
        %s2259 = scalar_lea.sflag [#allocation4], %s2258
        %s2260 = sand.u32 %s526, 1
        %s2261 = smul.addr %s2260, 8
        %s2262 = scalar_lea.vmem [#allocation7], %s2261
        // Predicated region
        $region105: #{tpu_custom_call.1} parent=91 // pred_check
          %p2263 = pneg %p536
        $region106: #{tpu_custom_call.1} parent=91 // pred_check_branch
          %2265 = sbr.rel (%p2263) target = $region108
        $region107: #{tpu_custom_call.1} parent=91 // pred_region
          %s2267 = ssub.s32 128, 128
          %2268 = vsyncadd %s2259, %s2267
          %s2269 = smul.addr %s42, 128
          %s2270 = scalar_lea.hbm %s18, %s2269
          %s2272 = sshll.u32 %s2262, 4
          %s2273 = int_to_ptr.vmem [resolvable:$true] %s2272
          %2275 = dma.vmem_to_hbm [thread:$0]  %s2273, 128, %s2270, %s2259
        $region108: #{tpu_custom_call.1} parent=91 // pred_fallthru
          _
      $region92: #{tpu_custom_call.1} parent=5 // pred_fallthru
        _
      %p2276 = scmp.le.s32.totalorder 2, %s33
      // Predicated region
      $region109: #{tpu_custom_call.1} parent=5 // pred_check
        %p2277 = pneg %p2276
      $region110: #{tpu_custom_call.1} parent=5 // pred_check_branch
        %2279 = sbr.rel (%p2277) target = $region112
      $region111: #{tpu_custom_call.1} parent=5 // pred_region
        %s2280 = ssub.s32 %s33, 2
        // Predicated region
        $region113: #{tpu_custom_call.1} parent=111 // pred_check
          %p2281 = pneg %p542
        $region114: #{tpu_custom_call.1} parent=111 // pred_check_branch
          %2283 = sbr.rel (%p2281) target = $region116
        $region115: #{tpu_custom_call.1} parent=111 // pred_region
          %s2284 = sand.u32 %s527, 1
          %s2285 = scalar_lea.sflag [#allocation4], %s2284
          %s2286 = sand.u32 %s527, 1
          %s2287 = smul.addr %s2286, 8
          %s2288 = scalar_lea.vmem [#allocation7], %s2287
          %2289 = dma.done %s2285, 128
        $region116: #{tpu_custom_call.1} parent=111 // pred_fallthru
          _
      $region112: #{tpu_custom_call.1} parent=5 // pred_fallthru
        _
    $region6: #{tpu_custom_call.1} parent=1 // loop_footer
      %s37 = sadd.s32 1, %s33
    $region7: #{tpu_custom_call.1} parent=1 // loop_footer_branch
      %32 = sbr.rel target = $region3
    $region8: #{tpu_custom_call.1} parent=1 // loop_exit
      _
    %2290 = vsyncpa [#allocation3], 1
    %s2291 = scalar_lea.sflag [#allocation3], 1
    %2292 = vsyncpa %s2291, 1
    %2293 = vsyncpa [#allocation6], 1
    %s2294 = scalar_lea.sflag [#allocation6], 1
    %2295 = vsyncpa %s2294, 1
    %2296 = vsyncpa [#allocation4], 1
    %s2297 = scalar_lea.sflag [#allocation4], 1
    %2298 = vsyncpa %s2297, 1

</llo_original>
